<compile_context>
chip_gen: v7x
topology: tpu7x:2x2x1
jax: 0.10.0
libtpu: 0.0.40
codegen_flags: <defaults>
</compile_context>

<pallas_src>
import functools

import jax
import jax.numpy as jnp
import numpy as np
from jax import lax
from jax.experimental import pallas as pl
from jax.experimental.pallas import tpu as pltpu

_VMEM_LIMIT_BYTES = 48 * 1024 * 1024  # explicit scoped-VMEM budget


# ---------------------------------------------------------------------------
# In-kernel helpers (kept in f32)
# ---------------------------------------------------------------------------
def _layernorm(x, eps=1e-6):
    # LayerNorm(elementwise_affine=False) over the last dim.
    mean = jnp.mean(x, axis=-1, keepdims=True)
    xc = x - mean
    var = jnp.mean(xc * xc, axis=-1, keepdims=True)
    return xc * lax.rsqrt(var + eps)


def _gelu_tanh(x):
    # nn.GELU(approximate='tanh')
    c = jnp.sqrt(2.0 / jnp.pi).astype(x.dtype)
    return 0.5 * x * (1.0 + jnp.tanh(c * (x + 0.044715 * x * x * x)))


def _pick_tile(n, target):
    """Largest divisor of n that is <= target (keeps grids exact)."""
    t = min(target, n)
    while n % t != 0:
        t -= 1
    return t


# ---------------------------------------------------------------------------
# Kernel 1: adaLN modulation + norm1 + QKV projection   (grid: B x N-tiles)
# ---------------------------------------------------------------------------
def _qkv_kernel(x_ref, t_ref, sst_ref, qkv_w_ref, qkv_b_ref,
                q_ref, k_ref, v_ref, *, attn_scale):
    x = x_ref[0].astype(jnp.float32)                      # (tn, C)
    C = x.shape[-1]

    mod = sst_ref[...] + t_ref[0]                         # (6, C) f32
    shift_msa = mod[0:1]
    scale_msa = mod[1:2]

    xn = _layernorm(x)
    xm = xn * (1.0 + scale_msa) + shift_msa               # t2i_modulate, f32

    # bf16 operands, f32 accumulation on the MXU.
    qkv = jnp.dot(xm.astype(jnp.bfloat16), qkv_w_ref[...],
                  preferred_element_type=jnp.float32) + qkv_b_ref[0]   # (tn, 3C)

    q = qkv[:, 0 * C:1 * C] * attn_scale                  # fold 1/sqrt(hd) into q
    k = qkv[:, 1 * C:2 * C]
    v = qkv[:, 2 * C:3 * C]

    q_ref[0] = q.astype(q_ref.dtype)
    k_ref[0] = k.astype(k_ref.dtype)
    v_ref[0] = v.astype(v_ref.dtype)


# ---------------------------------------------------------------------------
# Kernel 2: flash attention (online softmax)  grid: (B, H, q-tiles, kv-tiles)
# ---------------------------------------------------------------------------
def _flash_attn_kernel(q_ref, k_ref, v_ref, o_ref, m_sc, l_sc, acc_sc):
    kv = pl.program_id(3)

    @pl.when(kv == 0)
    def _():
        m_sc[...] = jnp.full(m_sc.shape, -jnp.inf, jnp.float32)
        l_sc[...] = jnp.zeros(l_sc.shape, jnp.float32)
        acc_sc[...] = jnp.zeros(acc_sc.shape, jnp.float32)

    q = q_ref[0, 0]                                       # (tq, hd) bf16 (pre-scaled)
    k = k_ref[0, 0]                                       # (tk, hd) bf16
    v = v_ref[0, 0]                                       # (tk, hd) bf16

    # scores: contract the head dim of q and k directly (no explicit k.T).
    s = lax.dot_general(q, k, (((1,), (1,)), ((), ())),
                        preferred_element_type=jnp.float32)            # (tq, tk)

    m_prev = m_sc[...]                                    # (tq, 1)
    m_new = jnp.maximum(m_prev, jnp.max(s, axis=-1, keepdims=True))
    alpha = jnp.exp(m_prev - m_new)
    p = jnp.exp(s - m_new)                                # (tq, tk) f32

    l_sc[...] = alpha * l_sc[...] + jnp.sum(p, axis=-1, keepdims=True)
    acc_sc[...] = alpha * acc_sc[...] + jnp.dot(
        p.astype(jnp.bfloat16), v, preferred_element_type=jnp.float32)
    m_sc[...] = m_new

    @pl.when(kv == pl.num_programs(3) - 1)
    def _():
        inv_l = pl.reciprocal(l_sc[...], approx=True)     # EUP, ~free
        o_ref[0, 0] = (acc_sc[...] * inv_l).astype(o_ref.dtype)


# ---------------------------------------------------------------------------
# Kernel 3: out-proj + gated residual + norm2 + MLP + gated residual
#           (grid: B x N-tiles)
# ---------------------------------------------------------------------------
def _out_kernel(x_ref, attn_ref, t_ref, sst_ref,
                proj_w_ref, proj_b_ref, fc1_w_ref, fc1_b_ref,
                fc2_w_ref, fc2_b_ref, o_ref):
    x = x_ref[0].astype(jnp.float32)                      # (tn, C)

    mod = sst_ref[...] + t_ref[0]                         # (6, C)
    gate_msa = mod[2:3]
    shift_mlp = mod[3:4]
    scale_mlp = mod[4:5]
    gate_mlp = mod[5:6]

    # attention output projection (bf16 x bf16 -> f32 acc)
    attn = jnp.dot(attn_ref[0], proj_w_ref[...],
                   preferred_element_type=jnp.float32) + proj_b_ref[0]
    x = x + gate_msa * attn

    # MLP branch
    xn2 = _layernorm(x)
    xm2 = xn2 * (1.0 + scale_mlp) + shift_mlp
    h1 = jnp.dot(xm2.astype(jnp.bfloat16), fc1_w_ref[...],
                 preferred_element_type=jnp.float32) + fc1_b_ref[0]
    h1 = _gelu_tanh(h1)                                   # f32 elementwise
    h2 = jnp.dot(h1.astype(jnp.bfloat16), fc2_w_ref[...],
                 preferred_element_type=jnp.float32) + fc2_b_ref[0]
    x = x + gate_mlp * h2

    o_ref[0] = x.astype(o_ref.dtype)


# ---------------------------------------------------------------------------
# Wrapper
# ---------------------------------------------------------------------------
def pixart_block(x, t, params, num_heads, *,
                 block_q=256, block_kv=512, block_n=256):
    B, N, C = x.shape
    assert C % num_heads == 0
    hd = C // num_heads
    Hm = params["fc1_w"].shape[1]
    attn_scale = 1.0 / float(np.sqrt(hd))

    # Tile sizes: largest divisor of N <= the MXU-friendly targets.
    bq = _pick_tile(N, block_q)
    bkv = _pick_tile(N, block_kv)
    bn = _pick_tile(N, block_n)

    f32, bf16 = jnp.float32, jnp.bfloat16

    t3 = t.reshape(B, 6, C).astype(f32)
    sst = params["sst"].astype(f32)

    # Matmul operands in bf16; biases stay f32.
    qkv_w = params["qkv_w"].astype(bf16)
    proj_w = params["proj_w"].astype(bf16)
    fc1_w = params["fc1_w"].astype(bf16)
    fc2_w = params["fc2_w"].astype(bf16)
    qkv_b = params["qkv_b"].astype(f32)
    proj_b = params["proj_b"].astype(f32)
    fc1_b = params["fc1_b"].astype(f32)
    fc2_b = params["fc2_b"].astype(f32)

    def cparams(sem):
        return pltpu.CompilerParams(dimension_semantics=sem,
                                    vmem_limit_bytes=_VMEM_LIMIT_BYTES)

    n_tiles = N // bn

    # ---------------- kernel 1: QKV projection ----------------
    q, k, v = pl.pallas_call(
        functools.partial(_qkv_kernel, attn_scale=attn_scale),
        out_shape=(jax.ShapeDtypeStruct((B, N, C), bf16),
                   jax.ShapeDtypeStruct((B, N, C), bf16),
                   jax.ShapeDtypeStruct((B, N, C), bf16)),
        grid=(B, n_tiles),
        in_specs=[
            pl.BlockSpec((1, bn, C), lambda b, i: (b, i, 0)),     # x
            pl.BlockSpec((1, 6, C), lambda b, i: (b, 0, 0)),      # t (B,6,C)
            pl.BlockSpec((6, C), lambda b, i: (0, 0)),            # scale_shift_table
            pl.BlockSpec((C, 3 * C), lambda b, i: (0, 0)),        # qkv_w (bf16)
            pl.BlockSpec((1, 3 * C), lambda b, i: (0, 0)),        # qkv_b
        ],
        out_specs=[
            pl.BlockSpec((1, bn, C), lambda b, i: (b, i, 0)),
            pl.BlockSpec((1, bn, C), lambda b, i: (b, i, 0)),
            pl.BlockSpec((1, bn, C), lambda b, i: (b, i, 0)),
        ],
        compiler_params=cparams(("parallel", "parallel")),
    )(x, t3, sst, qkv_w, qkv_b)

    # Head-major (B, H, N, hd) views — plain XLA layout plumbing (keeps the
    # kernel block last dim equal to the full array dim, so (8,128) tiling
    # constraints are satisfied for any head dim).
    def to_heads(a):
        return a.reshape(B, N, num_heads, hd).transpose(0, 2, 1, 3)

    qh, kh, vh = to_heads(q), to_heads(k), to_heads(v)

    # ---------------- kernel 2: flash attention ----------------
    nq, nkv = N // bq, N // bkv
    attn_heads = pl.pallas_call(
        _flash_attn_kernel,
        out_shape=jax.ShapeDtypeStruct((B, num_heads, N, hd), bf16),
        grid=(B, num_heads, nq, nkv),
        in_specs=[
            pl.BlockSpec((1, 1, bq, hd), lambda b, h, qi, ki: (b, h, qi, 0)),
            pl.BlockSpec((1, 1, bkv, hd), lambda b, h, qi, ki: (b, h, ki, 0)),
            pl.BlockSpec((1, 1, bkv, hd), lambda b, h, qi, ki: (b, h, ki, 0)),
        ],
        out_specs=pl.BlockSpec((1, 1, bq, hd), lambda b, h, qi, ki: (b, h, qi, 0)),
        scratch_shapes=[
            pltpu.VMEM((bq, 1), f32),     # m (running max)
            pltpu.VMEM((bq, 1), f32),     # l (running denom)
            pltpu.VMEM((bq, hd), f32),    # acc
        ],
        compiler_params=cparams(("parallel", "parallel", "parallel", "arbitrary")),
    )(qh, kh, vh)

    attn = attn_heads.transpose(0, 2, 1, 3).reshape(B, N, C)   # (B, N, C) bf16

    # ---------------- kernel 3: proj + residual + MLP ----------------
    out = pl.pallas_call(
        _out_kernel,
        out_shape=jax.ShapeDtypeStruct((B, N, C), x.dtype),
        grid=(B, n_tiles),
        in_specs=[
            pl.BlockSpec((1, bn, C), lambda b, i: (b, i, 0)),     # x (residual)
            pl.BlockSpec((1, bn, C), lambda b, i: (b, i, 0)),     # attn (pre-proj)
            pl.BlockSpec((1, 6, C), lambda b, i: (b, 0, 0)),      # t
            pl.BlockSpec((6, C), lambda b, i: (0, 0)),            # scale_shift_table
            pl.BlockSpec((C, C), lambda b, i: (0, 0)),            # proj_w (bf16)
            pl.BlockSpec((1, C), lambda b, i: (0, 0)),            # proj_b
            pl.BlockSpec((C, Hm), lambda b, i: (0, 0)),           # fc1_w (bf16)
            pl.BlockSpec((1, Hm), lambda b, i: (0, 0)),           # fc1_b
            pl.BlockSpec((Hm, C), lambda b, i: (0, 0)),           # fc2_w (bf16)
            pl.BlockSpec((1, C), lambda b, i: (0, 0)),            # fc2_b
        ],
        out_specs=pl.BlockSpec((1, bn, C), lambda b, i: (b, i, 0)),
        compiler_params=cparams(("parallel", "parallel")),
    )(x, attn, t3, sst, proj_w, proj_b, fc1_w, fc1_b, fc2_w, fc2_b)

    return out


# ---------------------------------------------------------------------------
# Pure-JAX f32 reference (the PyTorch semantics)
# ---------------------------------------------------------------------------
def pixart_block_ref(x, t, params, num_heads):
    B, N, C = x.shape
    hd = C // num_heads
    mod = params["sst"][None] + t.reshape(B, 6, C)
    sh_msa, sc_msa, g_msa, sh_mlp, sc_mlp, g_mlp = [
        mod[:, i:i + 1, :] for i in range(6)]

    def ln(v):
        m = jnp.mean(v, axis=-1, keepdims=True)
        c = v - m
        return c * lax.rsqrt(jnp.mean(c * c, axis=-1, keepdims=True) + 1e-6)

    xm = ln(x) * (1.0 + sc_msa) + sh_msa
    qkv = xm @ params["qkv_w"] + params["qkv_b"]
    q, k, v = jnp.split(qkv, 3, axis=-1)
    q = q.reshape(B, N, num_heads, hd).transpose(0, 2, 1, 3)
    k = k.reshape(B, N, num_heads, hd).transpose(0, 2, 1, 3)
    v = v.reshape(B, N, num_heads, hd).transpose(0, 2, 1, 3)
    s = jnp.einsum("bhqd,bhkd->bhqk", q, k) / jnp.sqrt(jnp.float32(hd))
    p = jax.nn.softmax(s, axis=-1)
    o = jnp.einsum("bhqk,bhkd->bhqd", p, v).transpose(0, 2, 1, 3).reshape(B, N, C)
    o = o @ params["proj_w"] + params["proj_b"]
    x = x + g_msa * o

    xm2 = ln(x) * (1.0 + sc_mlp) + sh_mlp
    h1 = jax.nn.gelu(xm2 @ params["fc1_w"] + params["fc1_b"], approximate=True)
    h2 = h1 @ params["fc2_w"] + params["fc2_b"]
    return x + g_mlp * h2


# ---------------------------------------------------------------------------
# Main
# ---------------------------------------------------------------------------
if __name__ == "__main__":
    B, N, C = 2, 8, 32
    num_heads = 4
    mlp_ratio = 4.0
    Hm = int(C * mlp_ratio)

    key = jax.random.PRNGKey(0)
    keys = jax.random.split(key, 11)

    x = jax.random.normal(keys[0], (B, N, C), dtype=jnp.float32)
    t = jax.random.normal(keys[1], (B, 6 * C), dtype=jnp.float32)

    params = {
        "sst": jax.random.normal(keys[2], (6, C), jnp.float32) / np.sqrt(C),
        "qkv_w": jax.random.normal(keys[3], (C, 3 * C), jnp.float32) * 0.05,
        "qkv_b": jax.random.normal(keys[4], (1, 3 * C), jnp.float32) * 0.05,
        "proj_w": jax.random.normal(keys[5], (C, C), jnp.float32) * 0.05,
        "proj_b": jax.random.normal(keys[6], (1, C), jnp.float32) * 0.05,
        "fc1_w": jax.random.normal(keys[7], (C, Hm), jnp.float32) * 0.05,
        "fc1_b": jax.random.normal(keys[8], (1, Hm), jnp.float32) * 0.05,
        "fc2_w": jax.random.normal(keys[9], (Hm, C), jnp.float32) * 0.05,
        "fc2_b": jax.random.normal(keys[10], (1, C), jnp.float32) * 0.05,
    }

    fn = jax.jit(functools.partial(pixart_block, num_heads=num_heads))
    out = jax.block_until_ready(fn(x, t, params))

    ref = jax.block_until_ready(pixart_block_ref(x, t, params, num_heads))

    # Matmul operands run in bf16 on the MXU, so compare against the f32
    # reference with a bf16-appropriate tolerance.
    np.testing.assert_allclose(np.asarray(out), np.asarray(ref),
                               rtol=3e-2, atol=3e-2)
    print("KERNEL_OK")
</pallas_src>

<mosaic_0001>
module attributes {stable_mosaic.version = 11 : i64} {
  func.func @_qkv_kernel(%arg0: i32, %arg1: i32, %arg2: memref<1x8x32xf32, #tpu.memory_space<vmem>>, %arg3: memref<1x6x32xf32, #tpu.memory_space<vmem>>, %arg4: memref<6x32xf32, #tpu.memory_space<vmem>>, %arg5: memref<32x96xbf16, #tpu.memory_space<vmem>>, %arg6: memref<1x96xf32, #tpu.memory_space<vmem>>, %arg7: memref<1x8x32xbf16, #tpu.memory_space<vmem>>, %arg8: memref<1x8x32xbf16, #tpu.memory_space<vmem>>, %arg9: memref<1x8x32xbf16, #tpu.memory_space<vmem>>) attributes {dimension_semantics = [#tpu.dimension_semantics<parallel>, #tpu.dimension_semantics<parallel>], iteration_bounds = array<i64: 2, 1>, scalar_prefetch = 0 : i64, scratch_operands = 0 : i64, tpu.core_type = #tpu.core_type<tc>, window_params = [{transform_indices = @transform_0, window_bounds = array<i64: 1, 8, 32>}, {transform_indices = @transform_1, window_bounds = array<i64: 1, 6, 32>}, {pipeline_mode = #tpu.pipeline_mode<synchronous>, transform_indices = @transform_2, window_bounds = array<i64: 6, 32>}, {pipeline_mode = #tpu.pipeline_mode<synchronous>, transform_indices = @transform_3, window_bounds = array<i64: 32, 96>}, {pipeline_mode = #tpu.pipeline_mode<synchronous>, transform_indices = @transform_4, window_bounds = array<i64: 1, 96>}, {transform_indices = @transform_5, window_bounds = array<i64: 1, 8, 32>}, {transform_indices = @transform_6, window_bounds = array<i64: 1, 8, 32>}, {transform_indices = @transform_7, window_bounds = array<i64: 1, 8, 32>}]} {
    %c0 = arith.constant 0 : index
    %c0_0 = arith.constant 0 : index
    %c0_1 = arith.constant 0 : index
    %0 = vector.load %arg2[%c0, %c0_0, %c0_1] : memref<1x8x32xf32, #tpu.memory_space<vmem>>, vector<1x8x32xf32>
    %1 = vector.shape_cast %0 : vector<1x8x32xf32> to vector<8x32xf32>
    %c0_2 = arith.constant 0 : index
    %c0_3 = arith.constant 0 : index
    %2 = vector.load %arg4[%c0_2, %c0_3] : memref<6x32xf32, #tpu.memory_space<vmem>>, vector<6x32xf32>
    %c0_4 = arith.constant 0 : index
    %c0_5 = arith.constant 0 : index
    %c0_6 = arith.constant 0 : index
    %3 = vector.load %arg3[%c0_4, %c0_5, %c0_6] : memref<1x6x32xf32, #tpu.memory_space<vmem>>, vector<1x6x32xf32>
    %4 = vector.shape_cast %3 : vector<1x6x32xf32> to vector<6x32xf32>
    %5 = arith.addf %2, %4 : vector<6x32xf32>
    %6 = vector.extract_strided_slice %5 {offsets = [0, 0], sizes = [1, 32], strides = [1, 1]} : vector<6x32xf32> to vector<1x32xf32>
    %7 = vector.extract_strided_slice %5 {offsets = [1, 0], sizes = [1, 32], strides = [1, 1]} : vector<6x32xf32> to vector<1x32xf32>
    %cst = arith.constant dense<0.000000e+00> : vector<8xf32>
    %8 = vector.multi_reduction <add>, %1, %cst [1] : vector<8x32xf32> to vector<8xf32>
    %9 = vector.shape_cast %8 : vector<8xf32> to vector<8x1xf32>
    %cst_7 = arith.constant 3.200000e+01 : f32
    %10 = vector.broadcast %cst_7 : f32 to vector<8x1xf32>
    %11 = arith.divf %9, %10 : vector<8x1xf32>
    %12 = vector.broadcast %11 : vector<8x1xf32> to vector<8x32xf32>
    %13 = arith.subf %1, %12 : vector<8x32xf32>
    %14 = arith.mulf %13, %13 : vector<8x32xf32>
    %cst_8 = arith.constant dense<0.000000e+00> : vector<8xf32>
    %15 = vector.multi_reduction <add>, %14, %cst_8 [1] : vector<8x32xf32> to vector<8xf32>
    %16 = vector.shape_cast %15 : vector<8xf32> to vector<8x1xf32>
    %cst_9 = arith.constant 3.200000e+01 : f32
    %17 = vector.broadcast %cst_9 : f32 to vector<8x1xf32>
    %18 = arith.divf %16, %17 : vector<8x1xf32>
    %cst_10 = arith.constant 9.99999997E-7 : f32
    %19 = vector.broadcast %cst_10 : f32 to vector<8x1xf32>
    %20 = arith.addf %18, %19 : vector<8x1xf32>
    %21 = math.rsqrt %20 : vector<8x1xf32>
    %22 = vector.broadcast %21 : vector<8x1xf32> to vector<8x32xf32>
    %23 = arith.mulf %13, %22 : vector<8x32xf32>
    %cst_11 = arith.constant 1.000000e+00 : f32
    %24 = vector.broadcast %cst_11 : f32 to vector<1x32xf32>
    %25 = arith.addf %24, %7 : vector<1x32xf32>
    %26 = vector.broadcast %25 : vector<1x32xf32> to vector<8x32xf32>
    %27 = arith.mulf %23, %26 : vector<8x32xf32>
    %28 = vector.broadcast %6 : vector<1x32xf32> to vector<8x32xf32>
    %29 = arith.addf %27, %28 : vector<8x32xf32>
    %30 = arith.truncf %29 : vector<8x32xf32> to vector<8x32xbf16>
    %c0_12 = arith.constant 0 : index
    %c0_13 = arith.constant 0 : index
    %31 = vector.load %arg5[%c0_12, %c0_13] : memref<32x96xbf16, #tpu.memory_space<vmem>>, vector<32x96xbf16>
    %cst_14 = arith.constant dense<0.000000e+00> : vector<8x96xf32>
    %32 = tpu.matmul %30, %31, %cst_14 {dimension_numbers = #tpu.dot_dimension_numbers<[1], [0], [0], [1], [0, 0, 1, 1], [], []>} : vector<8x32xbf16>, vector<32x96xbf16>, vector<8x96xf32> -> vector<8x96xf32>
    %c0_15 = arith.constant 0 : index
    %c0_16 = arith.constant 0 : index
    %33 = vector.load %arg6[%c0_15, %c0_16] : memref<1x96xf32, #tpu.memory_space<vmem>>, vector<1x96xf32>
    %34 = vector.shape_cast %33 : vector<1x96xf32> to vector<96xf32>
    %35 = vector.shape_cast %34 : vector<96xf32> to vector<1x96xf32>
    %36 = vector.broadcast %35 : vector<1x96xf32> to vector<8x96xf32>
    %37 = arith.addf %32, %36 : vector<8x96xf32>
    %38 = vector.extract_strided_slice %37 {offsets = [0, 0], sizes = [8, 32], strides = [1, 1]} : vector<8x96xf32> to vector<8x32xf32>
    %cst_17 = arith.constant 0.353553385 : f32
    %39 = vector.broadcast %cst_17 : f32 to vector<8x32xf32>
    %40 = arith.mulf %38, %39 : vector<8x32xf32>
    %41 = vector.extract_strided_slice %37 {offsets = [0, 32], sizes = [8, 32], strides = [1, 1]} : vector<8x96xf32> to vector<8x32xf32>
    %42 = vector.extract_strided_slice %37 {offsets = [0, 64], sizes = [8, 32], strides = [1, 1]} : vector<8x96xf32> to vector<8x32xf32>
    %43 = arith.truncf %40 : vector<8x32xf32> to vector<8x32xbf16>
    %c0_18 = arith.constant 0 : index
    %c0_19 = arith.constant 0 : index
    %c0_20 = arith.constant 0 : index
    %44 = vector.load %arg7[%c0_18, %c0_19, %c0_20] : memref<1x8x32xbf16, #tpu.memory_space<vmem>>, vector<1x8x32xbf16>
    %45 = vector.shape_cast %44 : vector<1x8x32xbf16> to vector<8x32xbf16>
    %46 = vector.shape_cast %43 : vector<8x32xbf16> to vector<1x8x32xbf16>
    tpu.vector_store %arg7[%c0_18, %c0_19, %c0_20], %46 {strides = array<i32>} : memref<1x8x32xbf16, #tpu.memory_space<vmem>>, vector<1x8x32xbf16>,
    %47 = arith.truncf %41 : vector<8x32xf32> to vector<8x32xbf16>
    %c0_21 = arith.constant 0 : index
    %c0_22 = arith.constant 0 : index
    %c0_23 = arith.constant 0 : index
    %48 = vector.load %arg8[%c0_21, %c0_22, %c0_23] : memref<1x8x32xbf16, #tpu.memory_space<vmem>>, vector<1x8x32xbf16>
    %49 = vector.shape_cast %48 : vector<1x8x32xbf16> to vector<8x32xbf16>
    %50 = vector.shape_cast %47 : vector<8x32xbf16> to vector<1x8x32xbf16>
    tpu.vector_store %arg8[%c0_21, %c0_22, %c0_23], %50 {strides = array<i32>} : memref<1x8x32xbf16, #tpu.memory_space<vmem>>, vector<1x8x32xbf16>,
    %51 = arith.truncf %42 : vector<8x32xf32> to vector<8x32xbf16>
    %c0_24 = arith.constant 0 : index
    %c0_25 = arith.constant 0 : index
    %c0_26 = arith.constant 0 : index
    %52 = vector.load %arg9[%c0_24, %c0_25, %c0_26] : memref<1x8x32xbf16, #tpu.memory_space<vmem>>, vector<1x8x32xbf16>
    %53 = vector.shape_cast %52 : vector<1x8x32xbf16> to vector<8x32xbf16>
    %54 = vector.shape_cast %51 : vector<8x32xbf16> to vector<1x8x32xbf16>
    tpu.vector_store %arg9[%c0_24, %c0_25, %c0_26], %54 {strides = array<i32>} : memref<1x8x32xbf16, #tpu.memory_space<vmem>>, vector<1x8x32xbf16>,
    return
  }
  func.func @transform_0(%arg0: i32, %arg1: i32) -> (i32, i32, i32) {
    %c0_i32 = arith.constant 0 : i32
    %c0_i32_0 = arith.constant 0 : i32
    return %arg0, %arg1, %c0_i32 : i32, i32, i32
  }
  func.func @transform_1(%arg0: i32, %arg1: i32) -> (i32, i32, i32) {
    %c0_i32 = arith.constant 0 : i32
    %c0_i32_0 = arith.constant 0 : i32
    %c0_i32_1 = arith.constant 0 : i32
    return %arg0, %c0_i32, %c0_i32_0 : i32, i32, i32
  }
  func.func @transform_2(%arg0: i32, %arg1: i32) -> (i32, i32) {
    %c0_i32 = arith.constant 0 : i32
    %c0_i32_0 = arith.constant 0 : i32
    %c0_i32_1 = arith.constant 0 : i32
    return %c0_i32, %c0_i32_0 : i32, i32
  }
  func.func @transform_3(%arg0: i32, %arg1: i32) -> (i32, i32) {
    %c0_i32 = arith.constant 0 : i32
    %c0_i32_0 = arith.constant 0 : i32
    %c0_i32_1 = arith.constant 0 : i32
    return %c0_i32, %c0_i32_0 : i32, i32
  }
  func.func @transform_4(%arg0: i32, %arg1: i32) -> (i32, i32) {
    %c0_i32 = arith.constant 0 : i32
    %c0_i32_0 = arith.constant 0 : i32
    %c0_i32_1 = arith.constant 0 : i32
    return %c0_i32, %c0_i32_0 : i32, i32
  }
  func.func @transform_5(%arg0: i32, %arg1: i32) -> (i32, i32, i32) {
    %c0_i32 = arith.constant 0 : i32
    %c0_i32_0 = arith.constant 0 : i32
    return %arg0, %arg1, %c0_i32 : i32, i32, i32
  }
  func.func @transform_6(%arg0: i32, %arg1: i32) -> (i32, i32, i32) {
    %c0_i32 = arith.constant 0 : i32
    %c0_i32_0 = arith.constant 0 : i32
    return %arg0, %arg1, %c0_i32 : i32, i32, i32
  }
  func.func @transform_7(%arg0: i32, %arg1: i32) -> (i32, i32, i32) {
    %c0_i32 = arith.constant 0 : i32
    %c0_i32_0 = arith.constant 0 : i32
    return %arg0, %arg1, %c0_i32 : i32, i32, i32
  }
}

module attributes {stable_mosaic.version = 11 : i64} {
  func.func @_flash_attn_kernel(%arg0: i32, %arg1: i32, %arg2: i32, %arg3: i32, %arg4: memref<1x1x8x8xbf16, #tpu.memory_space<vmem>>, %arg5: memref<1x1x8x8xbf16, #tpu.memory_space<vmem>>, %arg6: memref<1x1x8x8xbf16, #tpu.memory_space<vmem>>, %arg7: memref<1x1x8x8xbf16, #tpu.memory_space<vmem>>, %arg8: memref<8x1xf32, #tpu.memory_space<vmem>>, %arg9: memref<8x1xf32, #tpu.memory_space<vmem>>, %arg10: memref<8x8xf32, #tpu.memory_space<vmem>>) attributes {dimension_semantics = [#tpu.dimension_semantics<parallel>, #tpu.dimension_semantics<parallel>, #tpu.dimension_semantics<parallel>, #tpu.dimension_semantics<arbitrary>], iteration_bounds = array<i64: 2, 4, 1, 1>, scalar_prefetch = 0 : i64, scratch_operands = 3 : i64, tpu.core_type = #tpu.core_type<tc>, window_params = [{transform_indices = @transform_0, window_bounds = array<i64: 1, 1, 8, 8>}, {transform_indices = @transform_1, window_bounds = array<i64: 1, 1, 8, 8>}, {transform_indices = @transform_2, window_bounds = array<i64: 1, 1, 8, 8>}, {transform_indices = @transform_3, window_bounds = array<i64: 1, 1, 8, 8>}]} {
    %c0_i32 = arith.constant 0 : i32
    %0 = arith.cmpi eq, %arg3, %c0_i32 : i32
    %1 = arith.extui %0 : i1 to i32
    %c0_i32_0 = arith.constant 0 : i32
    %2 = arith.cmpi ne, %1, %c0_i32_0 : i32
    scf.if %2 {
      %cst_29 = arith.constant 0xFF800000 : f32
      %36 = vector.broadcast %cst_29 : f32 to vector<8x1xf32>
      %c0_30 = arith.constant 0 : index
      %c0_31 = arith.constant 0 : index
      %37 = vector.load %arg8[%c0_30, %c0_31] : memref<8x1xf32, #tpu.memory_space<vmem>>, vector<8x1xf32>
      tpu.vector_store %arg8[%c0_30, %c0_31], %36 {strides = array<i32>} : memref<8x1xf32, #tpu.memory_space<vmem>>, vector<8x1xf32>,
      %cst_32 = arith.constant 0.000000e+00 : f32
      %38 = vector.broadcast %cst_32 : f32 to vector<8x1xf32>
      %c0_33 = arith.constant 0 : index
      %c0_34 = arith.constant 0 : index
      %39 = vector.load %arg9[%c0_33, %c0_34] : memref<8x1xf32, #tpu.memory_space<vmem>>, vector<8x1xf32>
      tpu.vector_store %arg9[%c0_33, %c0_34], %38 {strides = array<i32>} : memref<8x1xf32, #tpu.memory_space<vmem>>, vector<8x1xf32>,
      %cst_35 = arith.constant 0.000000e+00 : f32
      %40 = vector.broadcast %cst_35 : f32 to vector<8x8xf32>
      %c0_36 = arith.constant 0 : index
      %c0_37 = arith.constant 0 : index
      %41 = vector.load %arg10[%c0_36, %c0_37] : memref<8x8xf32, #tpu.memory_space<vmem>>, vector<8x8xf32>
      tpu.vector_store %arg10[%c0_36, %c0_37], %40 {strides = array<i32>} : memref<8x8xf32, #tpu.memory_space<vmem>>, vector<8x8xf32>,
    } else {
    }
    %c0 = arith.constant 0 : index
    %c0_1 = arith.constant 0 : index
    %c0_2 = arith.constant 0 : index
    %c0_3 = arith.constant 0 : index
    %3 = vector.load %arg4[%c0, %c0_1, %c0_2, %c0_3] : memref<1x1x8x8xbf16, #tpu.memory_space<vmem>>, vector<1x1x8x8xbf16>
    %4 = vector.shape_cast %3 : vector<1x1x8x8xbf16> to vector<8x8xbf16>
    %c0_4 = arith.constant 0 : index
    %c0_5 = arith.constant 0 : index
    %c0_6 = arith.constant 0 : index
    %c0_7 = arith.constant 0 : index
    %5 = vector.load %arg5[%c0_4, %c0_5, %c0_6, %c0_7] : memref<1x1x8x8xbf16, #tpu.memory_space<vmem>>, vector<1x1x8x8xbf16>
    %6 = vector.shape_cast %5 : vector<1x1x8x8xbf16> to vector<8x8xbf16>
    %c0_8 = arith.constant 0 : index
    %c0_9 = arith.constant 0 : index
    %c0_10 = arith.constant 0 : index
    %c0_11 = arith.constant 0 : index
    %7 = vector.load %arg6[%c0_8, %c0_9, %c0_10, %c0_11] : memref<1x1x8x8xbf16, #tpu.memory_space<vmem>>, vector<1x1x8x8xbf16>
    %8 = vector.shape_cast %7 : vector<1x1x8x8xbf16> to vector<8x8xbf16>
    %cst = arith.constant dense<0.000000e+00> : vector<8x8xf32>
    %9 = tpu.matmul %4, %6, %cst {dimension_numbers = #tpu.dot_dimension_numbers<[1], [1], [0], [0], [0, 0, 1, 0], [], []>} : vector<8x8xbf16>, vector<8x8xbf16>, vector<8x8xf32> -> vector<8x8xf32>
    %c0_12 = arith.constant 0 : index
    %c0_13 = arith.constant 0 : index
    %10 = vector.load %arg8[%c0_12, %c0_13] : memref<8x1xf32, #tpu.memory_space<vmem>>, vector<8x1xf32>
    %cst_14 = arith.constant dense<0xFF800000> : vector<8xf32>
    %11 = vector.multi_reduction <maximumf>, %9, %cst_14 [1] : vector<8x8xf32> to vector<8xf32>
    %12 = vector.shape_cast %11 : vector<8xf32> to vector<8x1xf32>
    %13 = arith.maximumf %10, %12 : vector<8x1xf32>
    %14 = arith.subf %10, %13 : vector<8x1xf32>
    %15 = math.exp %14 : vector<8x1xf32>
    %16 = vector.broadcast %13 : vector<8x1xf32> to vector<8x8xf32>
    %17 = arith.subf %9, %16 : vector<8x8xf32>
    %18 = math.exp %17 : vector<8x8xf32>
    %c0_15 = arith.constant 0 : index
    %c0_16 = arith.constant 0 : index
    %19 = vector.load %arg9[%c0_15, %c0_16] : memref<8x1xf32, #tpu.memory_space<vmem>>, vector<8x1xf32>
    %20 = arith.mulf %15, %19 : vector<8x1xf32>
    %cst_17 = arith.constant dense<0.000000e+00> : vector<8xf32>
    %21 = vector.multi_reduction <add>, %18, %cst_17 [1] : vector<8x8xf32> to vector<8xf32>
    %22 = vector.shape_cast %21 : vector<8xf32> to vector<8x1xf32>
    %23 = arith.addf %20, %22 : vector<8x1xf32>
    %c0_18 = arith.constant 0 : index
    %c0_19 = arith.constant 0 : index
    %24 = vector.load %arg9[%c0_18, %c0_19] : memref<8x1xf32, #tpu.memory_space<vmem>>, vector<8x1xf32>
    tpu.vector_store %arg9[%c0_18, %c0_19], %23 {strides = array<i32>} : memref<8x1xf32, #tpu.memory_space<vmem>>, vector<8x1xf32>,
    %c0_20 = arith.constant 0 : index
    %c0_21 = arith.constant 0 : index
    %25 = vector.load %arg10[%c0_20, %c0_21] : memref<8x8xf32, #tpu.memory_space<vmem>>, vector<8x8xf32>
    %26 = vector.broadcast %15 : vector<8x1xf32> to vector<8x8xf32>
    %27 = arith.mulf %26, %25 : vector<8x8xf32>
    %28 = arith.truncf %18 : vector<8x8xf32> to vector<8x8xbf16>
    %cst_22 = arith.constant dense<0.000000e+00> : vector<8x8xf32>
    %29 = tpu.matmul %28, %8, %cst_22 {dimension_numbers = #tpu.dot_dimension_numbers<[1], [0], [0], [1], [0, 0, 1, 1], [], []>} : vector<8x8xbf16>, vector<8x8xbf16>, vector<8x8xf32> -> vector<8x8xf32>
    %30 = arith.addf %27, %29 : vector<8x8xf32>
    %c0_23 = arith.constant 0 : index
    %c0_24 = arith.constant 0 : index
    %31 = vector.load %arg10[%c0_23, %c0_24] : memref<8x8xf32, #tpu.memory_space<vmem>>, vector<8x8xf32>
    tpu.vector_store %arg10[%c0_23, %c0_24], %30 {strides = array<i32>} : memref<8x8xf32, #tpu.memory_space<vmem>>, vector<8x8xf32>,
    %c0_25 = arith.constant 0 : index
    %c0_26 = arith.constant 0 : index
    %32 = vector.load %arg8[%c0_25, %c0_26] : memref<8x1xf32, #tpu.memory_space<vmem>>, vector<8x1xf32>
    tpu.vector_store %arg8[%c0_25, %c0_26], %13 {strides = array<i32>} : memref<8x1xf32, #tpu.memory_space<vmem>>, vector<8x1xf32>,
    %c0_i32_27 = arith.constant 0 : i32
    %33 = arith.cmpi eq, %arg3, %c0_i32_27 : i32
    %34 = arith.extui %33 : i1 to i32
    %c0_i32_28 = arith.constant 0 : i32
    %35 = arith.cmpi ne, %34, %c0_i32_28 : i32
    scf.if %35 {
      %c0_29 = arith.constant 0 : index
      %c0_30 = arith.constant 0 : index
      %36 = vector.load %arg9[%c0_29, %c0_30] : memref<8x1xf32, #tpu.memory_space<vmem>>, vector<8x1xf32>
      %37 = tpu.reciprocal %36 {approx = true} : vector<8x1xf32> -> vector<8x1xf32>
      %c0_31 = arith.constant 0 : index
      %c0_32 = arith.constant 0 : index
      %38 = vector.load %arg10[%c0_31, %c0_32] : memref<8x8xf32, #tpu.memory_space<vmem>>, vector<8x8xf32>
      %39 = vector.broadcast %37 : vector<8x1xf32> to vector<8x8xf32>
      %40 = arith.mulf %38, %39 : vector<8x8xf32>
      %41 = arith.truncf %40 : vector<8x8xf32> to vector<8x8xbf16>
      %c0_33 = arith.constant 0 : index
      %c0_34 = arith.constant 0 : index
      %c0_35 = arith.constant 0 : index
      %c0_36 = arith.constant 0 : index
      %42 = vector.load %arg7[%c0_33, %c0_34, %c0_35, %c0_36] : memref<1x1x8x8xbf16, #tpu.memory_space<vmem>>, vector<1x1x8x8xbf16>
      %43 = vector.shape_cast %42 : vector<1x1x8x8xbf16> to vector<8x8xbf16>
      %44 = vector.shape_cast %41 : vector<8x8xbf16> to vector<1x1x8x8xbf16>
      tpu.vector_store %arg7[%c0_33, %c0_34, %c0_35, %c0_36], %44 {strides = array<i32>} : memref<1x1x8x8xbf16, #tpu.memory_space<vmem>>, vector<1x1x8x8xbf16>,
    } else {
    }
    return
  }
  func.func @transform_0(%arg0: i32, %arg1: i32, %arg2: i32, %arg3: i32) -> (i32, i32, i32, i32) {
    %c0_i32 = arith.constant 0 : i32
    %c0_i32_0 = arith.constant 0 : i32
    return %arg0, %arg1, %arg2, %c0_i32 : i32, i32, i32, i32
  }
  func.func @transform_1(%arg0: i32, %arg1: i32, %arg2: i32, %arg3: i32) -> (i32, i32, i32, i32) {
    %c0_i32 = arith.constant 0 : i32
    %c0_i32_0 = arith.constant 0 : i32
    return %arg0, %arg1, %arg3, %c0_i32 : i32, i32, i32, i32
  }
  func.func @transform_2(%arg0: i32, %arg1: i32, %arg2: i32, %arg3: i32) -> (i32, i32, i32, i32) {
    %c0_i32 = arith.constant 0 : i32
    %c0_i32_0 = arith.constant 0 : i32
    return %arg0, %arg1, %arg3, %c0_i32 : i32, i32, i32, i32
  }
  func.func @transform_3(%arg0: i32, %arg1: i32, %arg2: i32, %arg3: i32) -> (i32, i32, i32, i32) {
    %c0_i32 = arith.constant 0 : i32
    %c0_i32_0 = arith.constant 0 : i32
    return %arg0, %arg1, %arg2, %c0_i32 : i32, i32, i32, i32
  }
}

module attributes {stable_mosaic.version = 11 : i64} {
  func.func @_out_kernel(%arg0: i32, %arg1: i32, %arg2: memref<1x8x32xf32, #tpu.memory_space<vmem>>, %arg3: memref<1x8x32xbf16, #tpu.memory_space<vmem>>, %arg4: memref<1x6x32xf32, #tpu.memory_space<vmem>>, %arg5: memref<6x32xf32, #tpu.memory_space<vmem>>, %arg6: memref<32x32xbf16, #tpu.memory_space<vmem>>, %arg7: memref<1x32xf32, #tpu.memory_space<vmem>>, %arg8: memref<32x128xbf16, #tpu.memory_space<vmem>>, %arg9: memref<1x128xf32, #tpu.memory_space<vmem>>, %arg10: memref<128x32xbf16, #tpu.memory_space<vmem>>, %arg11: memref<1x32xf32, #tpu.memory_space<vmem>>, %arg12: memref<1x8x32xf32, #tpu.memory_space<vmem>>) attributes {dimension_semantics = [#tpu.dimension_semantics<parallel>, #tpu.dimension_semantics<parallel>], iteration_bounds = array<i64: 2, 1>, scalar_prefetch = 0 : i64, scratch_operands = 0 : i64, tpu.core_type = #tpu.core_type<tc>, window_params = [{transform_indices = @transform_0, window_bounds = array<i64: 1, 8, 32>}, {transform_indices = @transform_1, window_bounds = array<i64: 1, 8, 32>}, {transform_indices = @transform_2, window_bounds = array<i64: 1, 6, 32>}, {pipeline_mode = #tpu.pipeline_mode<synchronous>, transform_indices = @transform_3, window_bounds = array<i64: 6, 32>}, {pipeline_mode = #tpu.pipeline_mode<synchronous>, transform_indices = @transform_4, window_bounds = array<i64: 32, 32>}, {pipeline_mode = #tpu.pipeline_mode<synchronous>, transform_indices = @transform_5, window_bounds = array<i64: 1, 32>}, {pipeline_mode = #tpu.pipeline_mode<synchronous>, transform_indices = @transform_6, window_bounds = array<i64: 32, 128>}, {pipeline_mode = #tpu.pipeline_mode<synchronous>, transform_indices = @transform_7, window_bounds = array<i64: 1, 128>}, {pipeline_mode = #tpu.pipeline_mode<synchronous>, transform_indices = @transform_8, window_bounds = array<i64: 128, 32>}, {pipeline_mode = #tpu.pipeline_mode<synchronous>, transform_indices = @transform_9, window_bounds = array<i64: 1, 32>}, {transform_indices = @transform_10, window_bounds = array<i64: 1, 8, 32>}]} {
    %c0 = arith.constant 0 : index
    %c0_0 = arith.constant 0 : index
    %c0_1 = arith.constant 0 : index
    %0 = vector.load %arg2[%c0, %c0_0, %c0_1] : memref<1x8x32xf32, #tpu.memory_space<vmem>>, vector<1x8x32xf32>
    %1 = vector.shape_cast %0 : vector<1x8x32xf32> to vector<8x32xf32>
    %c0_2 = arith.constant 0 : index
    %c0_3 = arith.constant 0 : index
    %2 = vector.load %arg5[%c0_2, %c0_3] : memref<6x32xf32, #tpu.memory_space<vmem>>, vector<6x32xf32>
    %c0_4 = arith.constant 0 : index
    %c0_5 = arith.constant 0 : index
    %c0_6 = arith.constant 0 : index
    %3 = vector.load %arg4[%c0_4, %c0_5, %c0_6] : memref<1x6x32xf32, #tpu.memory_space<vmem>>, vector<1x6x32xf32>
    %4 = vector.shape_cast %3 : vector<1x6x32xf32> to vector<6x32xf32>
    %5 = arith.addf %2, %4 : vector<6x32xf32>
    %6 = vector.extract_strided_slice %5 {offsets = [2, 0], sizes = [1, 32], strides = [1, 1]} : vector<6x32xf32> to vector<1x32xf32>
    %7 = vector.extract_strided_slice %5 {offsets = [3, 0], sizes = [1, 32], strides = [1, 1]} : vector<6x32xf32> to vector<1x32xf32>
    %8 = vector.extract_strided_slice %5 {offsets = [4, 0], sizes = [1, 32], strides = [1, 1]} : vector<6x32xf32> to vector<1x32xf32>
    %9 = vector.extract_strided_slice %5 {offsets = [5, 0], sizes = [1, 32], strides = [1, 1]} : vector<6x32xf32> to vector<1x32xf32>
    %c0_7 = arith.constant 0 : index
    %c0_8 = arith.constant 0 : index
    %c0_9 = arith.constant 0 : index
    %10 = vector.load %arg3[%c0_7, %c0_8, %c0_9] : memref<1x8x32xbf16, #tpu.memory_space<vmem>>, vector<1x8x32xbf16>
    %11 = vector.shape_cast %10 : vector<1x8x32xbf16> to vector<8x32xbf16>
    %c0_10 = arith.constant 0 : index
    %c0_11 = arith.constant 0 : index
    %12 = vector.load %arg6[%c0_10, %c0_11] : memref<32x32xbf16, #tpu.memory_space<vmem>>, vector<32x32xbf16>
    %cst = arith.constant dense<0.000000e+00> : vector<8x32xf32>
    %13 = tpu.matmul %11, %12, %cst {dimension_numbers = #tpu.dot_dimension_numbers<[1], [0], [0], [1], [0, 0, 1, 1], [], []>} : vector<8x32xbf16>, vector<32x32xbf16>, vector<8x32xf32> -> vector<8x32xf32>
    %c0_12 = arith.constant 0 : index
    %c0_13 = arith.constant 0 : index
    %14 = vector.load %arg7[%c0_12, %c0_13] : memref<1x32xf32, #tpu.memory_space<vmem>>, vector<1x32xf32>
    %15 = vector.shape_cast %14 : vector<1x32xf32> to vector<32xf32>
    %16 = vector.shape_cast %15 : vector<32xf32> to vector<1x32xf32>
    %17 = vector.broadcast %16 : vector<1x32xf32> to vector<8x32xf32>
    %18 = arith.addf %13, %17 : vector<8x32xf32>
    %19 = vector.broadcast %6 : vector<1x32xf32> to vector<8x32xf32>
    %20 = arith.mulf %19, %18 : vector<8x32xf32>
    %21 = arith.addf %1, %20 : vector<8x32xf32>
    %cst_14 = arith.constant dense<0.000000e+00> : vector<8xf32>
    %22 = vector.multi_reduction <add>, %21, %cst_14 [1] : vector<8x32xf32> to vector<8xf32>
    %23 = vector.shape_cast %22 : vector<8xf32> to vector<8x1xf32>
    %cst_15 = arith.constant 3.200000e+01 : f32
    %24 = vector.broadcast %cst_15 : f32 to vector<8x1xf32>
    %25 = arith.divf %23, %24 : vector<8x1xf32>
    %26 = vector.broadcast %25 : vector<8x1xf32> to vector<8x32xf32>
    %27 = arith.subf %21, %26 : vector<8x32xf32>
    %28 = arith.mulf %27, %27 : vector<8x32xf32>
    %cst_16 = arith.constant dense<0.000000e+00> : vector<8xf32>
    %29 = vector.multi_reduction <add>, %28, %cst_16 [1] : vector<8x32xf32> to vector<8xf32>
    %30 = vector.shape_cast %29 : vector<8xf32> to vector<8x1xf32>
    %cst_17 = arith.constant 3.200000e+01 : f32
    %31 = vector.broadcast %cst_17 : f32 to vector<8x1xf32>
    %32 = arith.divf %30, %31 : vector<8x1xf32>
    %cst_18 = arith.constant 9.99999997E-7 : f32
    %33 = vector.broadcast %cst_18 : f32 to vector<8x1xf32>
    %34 = arith.addf %32, %33 : vector<8x1xf32>
    %35 = math.rsqrt %34 : vector<8x1xf32>
    %36 = vector.broadcast %35 : vector<8x1xf32> to vector<8x32xf32>
    %37 = arith.mulf %27, %36 : vector<8x32xf32>
    %cst_19 = arith.constant 1.000000e+00 : f32
    %38 = vector.broadcast %cst_19 : f32 to vector<1x32xf32>
    %39 = arith.addf %38, %8 : vector<1x32xf32>
    %40 = vector.broadcast %39 : vector<1x32xf32> to vector<8x32xf32>
    %41 = arith.mulf %37, %40 : vector<8x32xf32>
    %42 = vector.broadcast %7 : vector<1x32xf32> to vector<8x32xf32>
    %43 = arith.addf %41, %42 : vector<8x32xf32>
    %44 = arith.truncf %43 : vector<8x32xf32> to vector<8x32xbf16>
    %c0_20 = arith.constant 0 : index
    %c0_21 = arith.constant 0 : index
    %45 = vector.load %arg8[%c0_20, %c0_21] : memref<32x128xbf16, #tpu.memory_space<vmem>>, vector<32x128xbf16>
    %cst_22 = arith.constant dense<0.000000e+00> : vector<8x128xf32>
    %46 = tpu.matmul %44, %45, %cst_22 {dimension_numbers = #tpu.dot_dimension_numbers<[1], [0], [0], [1], [0, 0, 1, 1], [], []>} : vector<8x32xbf16>, vector<32x128xbf16>, vector<8x128xf32> -> vector<8x128xf32>
    %c0_23 = arith.constant 0 : index
    %c0_24 = arith.constant 0 : index
    %47 = vector.load %arg9[%c0_23, %c0_24] : memref<1x128xf32, #tpu.memory_space<vmem>>, vector<1x128xf32>
    %48 = vector.shape_cast %47 : vector<1x128xf32> to vector<128xf32>
    %49 = vector.shape_cast %48 : vector<128xf32> to vector<1x128xf32>
    %50 = vector.broadcast %49 : vector<1x128xf32> to vector<8x128xf32>
    %51 = arith.addf %46, %50 : vector<8x128xf32>
    %cst_25 = arith.constant 0.636619746 : f32
    %52 = math.sqrt %cst_25 : f32
    %cst_26 = arith.constant 5.000000e-01 : f32
    %53 = vector.broadcast %cst_26 : f32 to vector<8x128xf32>
    %54 = arith.mulf %53, %51 : vector<8x128xf32>
    %cst_27 = arith.constant 4.471500e-02 : f32
    %55 = vector.broadcast %cst_27 : f32 to vector<8x128xf32>
    %56 = arith.mulf %55, %51 : vector<8x128xf32>
    %57 = arith.mulf %56, %51 : vector<8x128xf32>
    %58 = arith.mulf %57, %51 : vector<8x128xf32>
    %59 = arith.addf %51, %58 : vector<8x128xf32>
    %60 = vector.broadcast %52 : f32 to vector<8x128xf32>
    %61 = arith.mulf %60, %59 : vector<8x128xf32>
    %62 = math.tanh %61 : vector<8x128xf32>
    %cst_28 = arith.constant 1.000000e+00 : f32
    %63 = vector.broadcast %cst_28 : f32 to vector<8x128xf32>
    %64 = arith.addf %63, %62 : vector<8x128xf32>
    %65 = arith.mulf %54, %64 : vector<8x128xf32>
    %66 = arith.truncf %65 : vector<8x128xf32> to vector<8x128xbf16>
    %c0_29 = arith.constant 0 : index
    %c0_30 = arith.constant 0 : index
    %67 = vector.load %arg10[%c0_29, %c0_30] : memref<128x32xbf16, #tpu.memory_space<vmem>>, vector<128x32xbf16>
    %cst_31 = arith.constant dense<0.000000e+00> : vector<8x32xf32>
    %68 = tpu.matmul %66, %67, %cst_31 {dimension_numbers = #tpu.dot_dimension_numbers<[1], [0], [0], [1], [0, 0, 1, 1], [], []>} : vector<8x128xbf16>, vector<128x32xbf16>, vector<8x32xf32> -> vector<8x32xf32>
    %c0_32 = arith.constant 0 : index
    %c0_33 = arith.constant 0 : index
    %69 = vector.load %arg11[%c0_32, %c0_33] : memref<1x32xf32, #tpu.memory_space<vmem>>, vector<1x32xf32>
    %70 = vector.shape_cast %69 : vector<1x32xf32> to vector<32xf32>
    %71 = vector.shape_cast %70 : vector<32xf32> to vector<1x32xf32>
    %72 = vector.broadcast %71 : vector<1x32xf32> to vector<8x32xf32>
    %73 = arith.addf %68, %72 : vector<8x32xf32>
    %74 = vector.broadcast %9 : vector<1x32xf32> to vector<8x32xf32>
    %75 = arith.mulf %74, %73 : vector<8x32xf32>
    %76 = arith.addf %21, %75 : vector<8x32xf32>
    %c0_34 = arith.constant 0 : index
    %c0_35 = arith.constant 0 : index
    %c0_36 = arith.constant 0 : index
    %77 = vector.load %arg12[%c0_34, %c0_35, %c0_36] : memref<1x8x32xf32, #tpu.memory_space<vmem>>, vector<1x8x32xf32>
    %78 = vector.shape_cast %77 : vector<1x8x32xf32> to vector<8x32xf32>
    %79 = vector.shape_cast %76 : vector<8x32xf32> to vector<1x8x32xf32>
    tpu.vector_store %arg12[%c0_34, %c0_35, %c0_36], %79 {strides = array<i32>} : memref<1x8x32xf32, #tpu.memory_space<vmem>>, vector<1x8x32xf32>,
    return
  }
  func.func @transform_0(%arg0: i32, %arg1: i32) -> (i32, i32, i32) {
    %c0_i32 = arith.constant 0 : i32
    %c0_i32_0 = arith.constant 0 : i32
    return %arg0, %arg1, %c0_i32 : i32, i32, i32
  }
  func.func @transform_1(%arg0: i32, %arg1: i32) -> (i32, i32, i32) {
    %c0_i32 = arith.constant 0 : i32
    %c0_i32_0 = arith.constant 0 : i32
    return %arg0, %arg1, %c0_i32 : i32, i32, i32
  }
  func.func @transform_2(%arg0: i32, %arg1: i32) -> (i32, i32, i32) {
    %c0_i32 = arith.constant 0 : i32
    %c0_i32_0 = arith.constant 0 : i32
    %c0_i32_1 = arith.constant 0 : i32
    return %arg0, %c0_i32, %c0_i32_0 : i32, i32, i32
  }
  func.func @transform_3(%arg0: i32, %arg1: i32) -> (i32, i32) {
    %c0_i32 = arith.constant 0 : i32
    %c0_i32_0 = arith.constant 0 : i32
    %c0_i32_1 = arith.constant 0 : i32
    return %c0_i32, %c0_i32_0 : i32, i32
  }
  func.func @transform_4(%arg0: i32, %arg1: i32) -> (i32, i32) {
    %c0_i32 = arith.constant 0 : i32
    %c0_i32_0 = arith.constant 0 : i32
    %c0_i32_1 = arith.constant 0 : i32
    return %c0_i32, %c0_i32_0 : i32, i32
  }
  func.func @transform_5(%arg0: i32, %arg1: i32) -> (i32, i32) {
    %c0_i32 = arith.constant 0 : i32
    %c0_i32_0 = arith.constant 0 : i32
    %c0_i32_1 = arith.constant 0 : i32
    return %c0_i32, %c0_i32_0 : i32, i32
  }
  func.func @transform_6(%arg0: i32, %arg1: i32) -> (i32, i32) {
    %c0_i32 = arith.constant 0 : i32
    %c0_i32_0 = arith.constant 0 : i32
    %c0_i32_1 = arith.constant 0 : i32
    return %c0_i32, %c0_i32_0 : i32, i32
  }
  func.func @transform_7(%arg0: i32, %arg1: i32) -> (i32, i32) {
    %c0_i32 = arith.constant 0 : i32
    %c0_i32_0 = arith.constant 0 : i32
    %c0_i32_1 = arith.constant 0 : i32
    return %c0_i32, %c0_i32_0 : i32, i32
  }
  func.func @transform_8(%arg0: i32, %arg1: i32) -> (i32, i32) {
    %c0_i32 = arith.constant 0 : i32
    %c0_i32_0 = arith.constant 0 : i32
    %c0_i32_1 = arith.constant 0 : i32
    return %c0_i32, %c0_i32_0 : i32, i32
  }
  func.func @transform_9(%arg0: i32, %arg1: i32) -> (i32, i32) {
    %c0_i32 = arith.constant 0 : i32
    %c0_i32_0 = arith.constant 0 : i32
    %c0_i32_1 = arith.constant 0 : i32
    return %c0_i32, %c0_i32_0 : i32, i32
  }
  func.func @transform_10(%arg0: i32, %arg1: i32) -> (i32, i32, i32) {
    %c0_i32 = arith.constant 0 : i32
    %c0_i32_0 = arith.constant 0 : i32
    return %arg0, %arg1, %c0_i32 : i32, i32, i32
  }
}

</mosaic_0001>

<llo_original>
// kernel: pixart_block.3
$region0: #{pixart_block.3}
  #allocation0 [shape = 'u32[]', space=smem, size = 0x4, offset = 0x4, fixed_abs, tag = 'smem constant byte address 0x4 - core index']
  #allocation1 [shape = 'u32[144,128]{1,0:T(1,128)}', space=vmem, size = 0x12000, scoped, tag = 'internal scratch']
  %s0 = inlined_call_operand.vmem [shape: f32[2,8,32], index: 0, kind: input, shape index: {}]
  %s1 = inlined_call_operand.vmem [shape: f32[2,6,32], index: 1, kind: input, shape index: {}]
  %s2 = inlined_call_operand.vmem [shape: f32[6,32], index: 2, kind: input, shape index: {}]
  %s3 = inlined_call_operand.vmem [shape: bf16[32,96], index: 3, kind: input, shape index: {}]
  %s4 = inlined_call_operand.vmem [shape: f32[1,96], index: 4, kind: input, shape index: {}]
  %s5 = inlined_call_operand.vmem [shape: bf16[2,8,32], index: 5, kind: output, shape index: {0}]
  %s6 = inlined_call_operand.vmem [shape: bf16[2,8,32], index: 6, kind: output, shape index: {1}]
  %s7 = inlined_call_operand.vmem [shape: bf16[2,8,32], index: 7, kind: output, shape index: {2}]
  %8 = xla_tuple %s5, %s6, %s7
  %s9 = sld [smem:[#allocation0]]
  $region69: #{pixart_block.3} parent=0
    _
  %s11 = ssub.s32 1, %s9
  %s12 = scalar_select 0, %s11, %s9
  loop: start=0, step=1, limit=4
  $region2: #{pixart_block.3} parent=0 // loop_pre_header
    _
  $region3: #{pixart_block.3} parent=0 // loop_header
    %s14 = sphi 0, %s18
    %p15 = scmp.ge.s32.totalorder %s14, 4
    %s21 = sphi 0, %s33
    %s22 = sphi 0, %s29
    %s23 = sphi 0, %s21
    %s24 = sphi 0, %s22
    %s25 = sphi 0, %s23
    %s26 = sphi 0, %s24
    %s38 = sphi 0, %s40
    %s41 = sphi 0, %s38
    %s42 = sphi 0, %s41
    %s58 = sphi 0, %s42
    %s64 = sphi 0, %s66
    %s67 = sphi 0, %s64
    %s68 = sphi 0, %s67
    %s84 = sphi 0, %s68
    %s88 = sphi 0, %s88
    %s90 = sphi 0, %s88
    %s91 = sphi 0, %s90
    %s105 = sphi 0, %s91
    %s109 = sphi 0, %s109
    %s111 = sphi 0, %s109
    %s112 = sphi 0, %s111
    %s126 = sphi 0, %s112
    %s130 = sphi 0, %s130
    %s132 = sphi 0, %s130
    %s133 = sphi 0, %s132
    %s147 = sphi 0, %s133
    %s155 = sphi 0, %s157
    %s158 = sphi 0, %s155
    %s159 = sphi 0, %s158
    %s175 = sphi 0, %s159
    %s183 = sphi 0, %s185
    %s186 = sphi 0, %s183
    %s187 = sphi 0, %s186
    %s203 = sphi 0, %s187
    %s211 = sphi 0, %s213
    %s214 = sphi 0, %s211
    %s215 = sphi 0, %s214
    %s231 = sphi 0, %s215
  $region4: #{pixart_block.3} parent=0 // loop_header_branch
    %17 = sbr.rel (%p15) target = $region8
  $region5: #{pixart_block.3} parent=0 // loop_body
    %s19 = ssub.s32 %s14, 1
    %s20 = ssub.s32 %s14, 2
    %s27 = sadd.s32 1, %s22
    %p28 = scmp.ge.s32.totalorder %s27, 1
    %s29 = scalar_select %p28, 0, %s27
    %s30 = sadd.s32 1, %s21
    %s31 = scalar_select %p28, %s30, %s21
    %p32 = scmp.ge.s32.totalorder %s31, 2
    %s33 = scalar_select %p32, 0, %s31
    %s34 = ssub.s32 %s21, %s33
    %s35 = ssub.s32 %s22, %s29
    %s36 = sor.u32 %s34, %s35
    %p37 = scmp.eq.s32.totalorder %s36, 0
    %s39 = sadd.s32 %s38, 1
    %s40 = scalar_select %p37, %s38, %s39
    %p43 = pneg %p37
    %p44 = scmp.eq.s32.totalorder %s14, 1
    %p45 = por %p43, %p44
    %p46 = scmp.ne.s32.totalorder %s38, %s41
    %p47 = scmp.eq.s32.totalorder %s14, 0
    %p48 = por %p46, %p47
    %p49 = scmp.ne.s32.totalorder %s38, %s41
    %p50 = scmp.eq.s32.totalorder %s19, 1
    %p51 = por %p49, %p50
    %p52 = scmp.ne.s32.totalorder %s41, %s42
    %p53 = scmp.eq.s32.totalorder %s19, 0
    %p54 = por %p52, %p53
    %p55 = scmp.ne.s32.totalorder %s41, %s42
    %p56 = scmp.eq.s32.totalorder %s20, 1
    %p57 = por %p55, %p56
    %p59 = scmp.ne.s32.totalorder %s42, %s58
    %p60 = scmp.eq.s32.totalorder %s20, 0
    %p61 = por %p59, %p60
    %s62 = ssub.s32 %s21, %s33
    %p63 = scmp.eq.s32.totalorder %s62, 0
    %s65 = sadd.s32 %s64, 1
    %s66 = scalar_select %p63, %s64, %s65
    %p69 = pneg %p63
    %p70 = scmp.eq.s32.totalorder %s14, 1
    %p71 = por %p69, %p70
    %p72 = scmp.ne.s32.totalorder %s64, %s67
    %p73 = scmp.eq.s32.totalorder %s14, 0
    %p74 = por %p72, %p73
    %p75 = scmp.ne.s32.totalorder %s64, %s67
    %p76 = scmp.eq.s32.totalorder %s19, 1
    %p77 = por %p75, %p76
    %p78 = scmp.ne.s32.totalorder %s67, %s68
    %p79 = scmp.eq.s32.totalorder %s19, 0
    %p80 = por %p78, %p79
    %p81 = scmp.ne.s32.totalorder %s67, %s68
    %p82 = scmp.eq.s32.totalorder %s20, 1
    %p83 = por %p81, %p82
    %p85 = scmp.ne.s32.totalorder %s68, %s84
    %p86 = scmp.eq.s32.totalorder %s20, 0
    %p87 = por %p85, %p86
    %s89 = sadd.s32 %s88, 1
    %p92 = scmp.eq.s32.totalorder %s14, 1
    %p93 = scmp.ne.s32.totalorder %s88, %s90
    %p94 = scmp.eq.s32.totalorder %s14, 0
    %p95 = por %p93, %p94
    %p96 = scmp.ne.s32.totalorder %s88, %s90
    %p97 = scmp.eq.s32.totalorder %s19, 1
    %p98 = por %p96, %p97
    %p99 = scmp.ne.s32.totalorder %s90, %s91
    %p100 = scmp.eq.s32.totalorder %s19, 0
    %p101 = por %p99, %p100
    %p102 = scmp.ne.s32.totalorder %s90, %s91
    %p103 = scmp.eq.s32.totalorder %s20, 1
    %p104 = por %p102, %p103
    %p106 = scmp.ne.s32.totalorder %s91, %s105
    %p107 = scmp.eq.s32.totalorder %s20, 0
    %p108 = por %p106, %p107
    %s110 = sadd.s32 %s109, 1
    %p113 = scmp.eq.s32.totalorder %s14, 1
    %p114 = scmp.ne.s32.totalorder %s109, %s111
    %p115 = scmp.eq.s32.totalorder %s14, 0
    %p116 = por %p114, %p115
    %p117 = scmp.ne.s32.totalorder %s109, %s111
    %p118 = scmp.eq.s32.totalorder %s19, 1
    %p119 = por %p117, %p118
    %p120 = scmp.ne.s32.totalorder %s111, %s112
    %p121 = scmp.eq.s32.totalorder %s19, 0
    %p122 = por %p120, %p121
    %p123 = scmp.ne.s32.totalorder %s111, %s112
    %p124 = scmp.eq.s32.totalorder %s20, 1
    %p125 = por %p123, %p124
    %p127 = scmp.ne.s32.totalorder %s112, %s126
    %p128 = scmp.eq.s32.totalorder %s20, 0
    %p129 = por %p127, %p128
    %s131 = sadd.s32 %s130, 1
    %p134 = scmp.eq.s32.totalorder %s14, 1
    %p135 = scmp.ne.s32.totalorder %s130, %s132
    %p136 = scmp.eq.s32.totalorder %s14, 0
    %p137 = por %p135, %p136
    %p138 = scmp.ne.s32.totalorder %s130, %s132
    %p139 = scmp.eq.s32.totalorder %s19, 1
    %p140 = por %p138, %p139
    %p141 = scmp.ne.s32.totalorder %s132, %s133
    %p142 = scmp.eq.s32.totalorder %s19, 0
    %p143 = por %p141, %p142
    %p144 = scmp.ne.s32.totalorder %s132, %s133
    %p145 = scmp.eq.s32.totalorder %s20, 1
    %p146 = por %p144, %p145
    %p148 = scmp.ne.s32.totalorder %s133, %s147
    %p149 = scmp.eq.s32.totalorder %s20, 0
    %p150 = por %p148, %p149
    %s151 = ssub.s32 %s21, %s33
    %s152 = ssub.s32 %s22, %s29
    %s153 = sor.u32 %s151, %s152
    %p154 = scmp.eq.s32.totalorder %s153, 0
    %s156 = sadd.s32 %s155, 1
    %s157 = scalar_select %p154, %s155, %s156
    %p160 = pneg %p154
    %p161 = scmp.eq.s32.totalorder %s14, 1
    %p162 = por %p160, %p161
    %p163 = scmp.ne.s32.totalorder %s155, %s158
    %p164 = scmp.eq.s32.totalorder %s14, 0
    %p165 = por %p163, %p164
    %p166 = scmp.ne.s32.totalorder %s155, %s158
    %p167 = scmp.eq.s32.totalorder %s19, 1
    %p168 = por %p166, %p167
    %p169 = scmp.ne.s32.totalorder %s158, %s159
    %p170 = scmp.eq.s32.totalorder %s19, 0
    %p171 = por %p169, %p170
    %p172 = scmp.ne.s32.totalorder %s158, %s159
    %p173 = scmp.eq.s32.totalorder %s20, 1
    %p174 = por %p172, %p173
    %p176 = scmp.ne.s32.totalorder %s159, %s175
    %p177 = scmp.eq.s32.totalorder %s20, 0
    %p178 = por %p176, %p177
    %s179 = ssub.s32 %s21, %s33
    %s180 = ssub.s32 %s22, %s29
    %s181 = sor.u32 %s179, %s180
    %p182 = scmp.eq.s32.totalorder %s181, 0
    %s184 = sadd.s32 %s183, 1
    %s185 = scalar_select %p182, %s183, %s184
    %p188 = pneg %p182
    %p189 = scmp.eq.s32.totalorder %s14, 1
    %p190 = por %p188, %p189
    %p191 = scmp.ne.s32.totalorder %s183, %s186
    %p192 = scmp.eq.s32.totalorder %s14, 0
    %p193 = por %p191, %p192
    %p194 = scmp.ne.s32.totalorder %s183, %s186
    %p195 = scmp.eq.s32.totalorder %s19, 1
    %p196 = por %p194, %p195
    %p197 = scmp.ne.s32.totalorder %s186, %s187
    %p198 = scmp.eq.s32.totalorder %s19, 0
    %p199 = por %p197, %p198
    %p200 = scmp.ne.s32.totalorder %s186, %s187
    %p201 = scmp.eq.s32.totalorder %s20, 1
    %p202 = por %p200, %p201
    %p204 = scmp.ne.s32.totalorder %s187, %s203
    %p205 = scmp.eq.s32.totalorder %s20, 0
    %p206 = por %p204, %p205
    %s207 = ssub.s32 %s21, %s33
    %s208 = ssub.s32 %s22, %s29
    %s209 = sor.u32 %s207, %s208
    %p210 = scmp.eq.s32.totalorder %s209, 0
    %s212 = sadd.s32 %s211, 1
    %s213 = scalar_select %p210, %s211, %s212
    %p216 = pneg %p210
    %p217 = scmp.eq.s32.totalorder %s14, 1
    %p218 = por %p216, %p217
    %p219 = scmp.ne.s32.totalorder %s211, %s214
    %p220 = scmp.eq.s32.totalorder %s14, 0
    %p221 = por %p219, %p220
    %p222 = scmp.ne.s32.totalorder %s211, %s214
    %p223 = scmp.eq.s32.totalorder %s19, 1
    %p224 = por %p222, %p223
    %p225 = scmp.ne.s32.totalorder %s214, %s215
    %p226 = scmp.eq.s32.totalorder %s19, 0
    %p227 = por %p225, %p226
    %p228 = scmp.ne.s32.totalorder %s214, %s215
    %p229 = scmp.eq.s32.totalorder %s20, 1
    %p230 = por %p228, %p229
    %p232 = scmp.ne.s32.totalorder %s215, %s231
    %p233 = scmp.eq.s32.totalorder %s20, 0
    %p234 = por %p232, %p233
    %p235 = scmp.le.s32.totalorder 1, %s14
    %p236 = scmp.lt.s32.totalorder %s14, 3
    %p237 = pnand %p235, %p236
    %p238 = pneg %p237
    // Predicated region
    $region9: #{pixart_block.3} parent=5 // pred_check
      _
    $region10: #{pixart_block.3} parent=5 // pred_check_branch
      %240 = sbr.rel (%p237) target = $region12
    $region11: #{pixart_block.3} parent=5 // pred_region
      %s241 = ssub.s32 %s14, 1
      // Predicated region
      $region13: #{pixart_block.3} parent=11 // pred_check
        %p242 = pneg %p101
      $region14: #{pixart_block.3} parent=11 // pred_check_branch
        %244 = sbr.rel (%p242) target = $region16
      $region15: #{pixart_block.3} parent=11 // pred_region
        _
      $region16: #{pixart_block.3} parent=11 // pred_fallthru
        _
      // Predicated region
      $region17: #{pixart_block.3} parent=11 // pred_check
        %p245 = pneg %p122
      $region18: #{pixart_block.3} parent=11 // pred_check_branch
        %247 = sbr.rel (%p245) target = $region20
      $region19: #{pixart_block.3} parent=11 // pred_region
        _
      $region20: #{pixart_block.3} parent=11 // pred_fallthru
        _
      // Predicated region
      $region21: #{pixart_block.3} parent=11 // pred_check
        %p248 = pneg %p143
      $region22: #{pixart_block.3} parent=11 // pred_check_branch
        %250 = sbr.rel (%p248) target = $region24
      $region23: #{pixart_block.3} parent=11 // pred_region
        _
      $region24: #{pixart_block.3} parent=11 // pred_fallthru
        _
    $region12: #{pixart_block.3} parent=5 // pred_fallthru
      _
    %p251 = scmp.lt.s32.totalorder %s14, 2
    // Predicated region
    $region25: #{pixart_block.3} parent=5 // pred_check
      %p252 = pneg %p251
    $region26: #{pixart_block.3} parent=5 // pred_check_branch
      %254 = sbr.rel (%p252) target = $region28
    $region27: #{pixart_block.3} parent=5 // pred_region
      // Predicated region
      $region29: #{pixart_block.3} parent=27 // pred_check
        %p255 = pneg %p48
      $region30: #{pixart_block.3} parent=27 // pred_check_branch
        %257 = sbr.rel (%p255) target = $region32
      $region31: #{pixart_block.3} parent=27 // pred_region
        %p258 = scmp.lt.s32.totalorder %s21, 1
        %s259 = scalar_select %p258, %s21, 1
        %p260 = scmp.lt.s32.totalorder %s22, 0
        %s261 = scalar_select %p260, %s22, 0
        %s262 = sadd.s32 %s261, %s259
        %s263 = smul.addr %s262, 8
        %s264 = scalar_lea.vmem %s0, %s263
      $region32: #{pixart_block.3} parent=27 // pred_fallthru
        _
      // Predicated region
      $region33: #{pixart_block.3} parent=27 // pred_check
        %p265 = pneg %p74
      $region34: #{pixart_block.3} parent=27 // pred_check_branch
        %267 = sbr.rel (%p265) target = $region36
      $region35: #{pixart_block.3} parent=27 // pred_region
        %p268 = scmp.lt.s32.totalorder %s21, 1
        %s269 = scalar_select %p268, %s21, 1
        %s270 = smul.addr %s269, 8
        %s271 = scalar_lea.vmem %s1, %s270
      $region36: #{pixart_block.3} parent=27 // pred_fallthru
        _
    $region28: #{pixart_block.3} parent=5 // pred_fallthru
      _
    %p272 = scmp.le.s32.totalorder 1, %s14
    %p273 = scmp.lt.s32.totalorder %s14, 3
    %p274 = pnand %p272, %p273
    %p275 = pneg %p274
    // Predicated region
    $region37: #{pixart_block.3} parent=5 // pred_check
      _
    $region38: #{pixart_block.3} parent=5 // pred_check_branch
      %277 = sbr.rel (%p274) target = $region40
    $region39: #{pixart_block.3} parent=5 // pred_region
      %s278 = ssub.s32 %s14, 1
      %p279 = scmp.lt.s32.totalorder %s23, 1
      %s280 = scalar_select %p279, %s23, 1
      %p281 = scmp.lt.s32.totalorder %s24, 0
      %s282 = scalar_select %p281, %s24, 0
      %s283 = sadd.s32 %s282, %s280
      %s284 = smul.addr %s283, 8
      %s285 = scalar_lea.vmem %s0, %s284
      %p286 = pneg %p54
      %p287 = pneg %p51
      %p288 = scmp.lt.s32.totalorder %s23, 1
      %s289 = scalar_select %p288, %s23, 1
      %s290 = smul.addr %s289, 8
      %s291 = scalar_lea.vmem %s1, %s290
      %p292 = pneg %p80
      %p293 = pneg %p77
      %p294 = pneg %p101
      %p295 = pneg %p98
      %p296 = pneg %p122
      %p297 = pneg %p119
      %p298 = pneg %p143
      %p299 = pneg %p140
      %p300 = pneg %p171
      %p301 = pneg %p168
      %p302 = scmp.lt.s32.totalorder %s23, 1
      %s303 = scalar_select %p302, %s23, 1
      %p304 = scmp.lt.s32.totalorder %s24, 0
      %s305 = scalar_select %p304, %s24, 0
      %s306 = sadd.s32 %s305, %s303
      %s307 = smul.addr %s306, 4
      %s308 = scalar_lea.vmem %s5, %s307
      %p309 = pneg %p199
      %p310 = pneg %p196
      %p311 = scmp.lt.s32.totalorder %s23, 1
      %s312 = scalar_select %p311, %s23, 1
      %p313 = scmp.lt.s32.totalorder %s24, 0
      %s314 = scalar_select %p313, %s24, 0
      %s315 = sadd.s32 %s314, %s312
      %s316 = smul.addr %s315, 4
      %s317 = scalar_lea.vmem %s6, %s316
      %p318 = pneg %p227
      %p319 = pneg %p224
      %p320 = scmp.lt.s32.totalorder %s23, 1
      %s321 = scalar_select %p320, %s23, 1
      %p322 = scmp.lt.s32.totalorder %s24, 0
      %s323 = scalar_select %p322, %s24, 0
      %s324 = sadd.s32 %s323, %s321
      %s325 = smul.addr %s324, 4
      %s326 = scalar_lea.vmem %s7, %s325
      %p327 = scmp.lt.s32.totalorder %s23, 1
      %s328 = scalar_select %p327, %s23, 1
      %p329 = scmp.lt.s32.totalorder %s24, 0
      %s330 = scalar_select %p329, %s24, 0
      %s331 = sadd.s32 %s330, %s328
      %s332 = smul.addr %s331, 8
      %s333 = scalar_lea.vmem %s0, %s332
      %p334 = scmp.lt.s32.totalorder %s23, 1
      %s335 = scalar_select %p334, %s23, 1
      %s336 = smul.addr %s335, 8
      %s337 = scalar_lea.vmem %s1, %s336
      %p338 = scmp.lt.s32.totalorder %s23, 1
      %s339 = scalar_select %p338, %s23, 1
      %p340 = scmp.lt.s32.totalorder %s24, 0
      %s341 = scalar_select %p340, %s24, 0
      %s342 = sadd.s32 %s341, %s339
      %s343 = smul.addr %s342, 4
      %s344 = scalar_lea.vmem %s5, %s343
      %p345 = scmp.lt.s32.totalorder %s23, 1
      %s346 = scalar_select %p345, %s23, 1
      %p347 = scmp.lt.s32.totalorder %s24, 0
      %s348 = scalar_select %p347, %s24, 0
      %s349 = sadd.s32 %s348, %s346
      %s350 = smul.addr %s349, 4
      %s351 = scalar_lea.vmem %s6, %s350
      %p352 = scmp.lt.s32.totalorder %s23, 1
      %s353 = scalar_select %p352, %s23, 1
      %p354 = scmp.lt.s32.totalorder %s24, 0
      %s355 = scalar_select %p354, %s24, 0
      %s356 = sadd.s32 %s355, %s353
      %s357 = smul.addr %s356, 4
      %s358 = scalar_lea.vmem %s7, %s357
      %v360 = vld [vmem:[%s333] sm:$0xff]
      %v361 = vld [vmem:[%s2] sm:$0x3f]
      %v362 = vld [vmem:[%s337] sm:$0x3f]
      %v363 = vadd.f32 %v361, %v362
      %vm364 = vcmask 261120
      %v365 = vsel %vm364, %v360, 0.0
      %366 = vadd.xlane.f32.xlu0 %v365
      %v367 = vpop.xlane.xlu0 %366
      %v368 = vrcp.pop 32.0
      %v369 = vmul.f32 %v367, %v368
      %v370 = vsub.f32 %v360, %v369
      %v371 = vmul.f32 %v370, %v370
      %v372 = vsel %vm364, %v371, 0.0
      %373 = vadd.xlane.f32.xlu0 %v372
      %v374 = vpop.xlane.xlu0 %373
      %v375 = vmul.f32 %v374, %v368
      %v376 = vadd.f32 %v375, 1e-06
      %v377 = vrsqrt.pop %v376
      %v378 = vmul.f32 %v370, %v377
      %v379 = vadd.f32 %v363, 1.0
      %v380 = vlaneseq
      %v381 = vshrl.u32 %v380, 7
      %v382 = vsub.s32 1, %v381
      %v383 = vrot.slane %v379, %v382
      %v384 = vmul.f32 %v378, %v383
      %v385 = vlaneseq
      %v386 = vshrl.u32 %v385, 7
      %v387 = vsub.s32 0, %v386
      %v388 = vrot.slane %v363, %v387
      %v389 = vadd.f32 %v384, %v388
      %v390 = vpack.c.bf16 %v389, %v389
      %v391 = vld [vmem:[%s3] sm:$0xf]
      %v392 = vld [vmem:[%s3 + $0x4] sm:$0xf]
      %v393 = vld [vmem:[%s3 + $0x8] sm:$0xf]
      %v394 = vld [vmem:[%s3 + $0xc] sm:$0xf]
      %v395 = vld [vmem:[%s4] sm:$0x1]
      %v397 = vlaneseq
      %v398 = vshrl.u32 %v397, 7
      %v399 = vsub.s32 0, %v398
      %v400 = vrot.slane %v395, %v399
      %v406 = vunpack.c.l.b16 %v391
      %v407 = vunpack.c.l.b16 %v392
      %v408 = vunpack.c.l.b16 %v393
      %v409 = vunpack.c.l.b16 %v394
      %v410 = vpack.c.b16 %v407, %v406
      %v411 = vpack.c.b16 %v409, %v408
      %v415 = vsel %vm364, %v390, 0
      %417 = vmatprep.subr.bf16.mxu0 0
      %418 = vmatpush1.bf16.msra.mxu0 %v410
      %419 = vmatprep.subr.bf16.mxu0 0
      %420 = vmatpush1.bf16.msra.mxu0 %v411
      %421 = vmatprep.subr.bf16.mxu0 0
      %422 = vmatpush1.bf16.msra.mxu0 0
      %423 = vmatprep.subr.bf16.mxu0 0
      %424 = vmatpush1.bf16.msra.mxu0 0
      %425 = vmatprep.subr.bf16.mxu0 0
      %426 = vmatpush1.bf16.msra.mxu0 0
      %427 = vmatprep.subr.bf16.mxu0 0
      %428 = vmatpush1.bf16.msra.mxu0 0
      %429 = vmatprep.subr.bf16.mxu0 0
      %430 = vmatpush1.bf16.msra.mxu0 0
      %431 = vmatprep.subr.bf16.mxu0 0
      %432 = vmatpush1.bf16.msra.mxu0 0
      %433 = vmatprep.subr.bf16.mxu0 0
      %434 = vmatpush1.bf16.msra.mxu0 0
      %435 = vmatprep.subr.bf16.mxu0 0
      %436 = vmatpush1.bf16.msra.mxu0 0
      %437 = vmatprep.subr.bf16.mxu0 0
      %438 = vmatpush1.bf16.msra.mxu0 0
      %439 = vmatprep.subr.bf16.mxu0 0
      %440 = vmatpush1.bf16.msra.mxu0 0
      %441 = vmatprep.subr.bf16.mxu0 0
      %442 = vmatpush1.bf16.msra.mxu0 0
      %443 = vmatprep.subr.bf16.mxu0 0
      %444 = vmatpush1.bf16.msra.mxu0 0
      %445 = vmatprep.subr.bf16.mxu0 0
      %446 = vmatpush1.bf16.msra.mxu0 0
      %447 = vmatprep.subr.bf16.mxu0 0
      %448 = vmatpush1.bf16.msra.mxu0 0
      %449 = vmatprep.mubr.bf16.mxu0 0
      %450 = vmatmul.mubr.bf16.gmra.mrb[0].mxu0 %v415
      %v451 = vpop.f32.mrb[0].mxu0
      %v452 = vadd.f32 %v400, %v451
      %v453 = vpop.f32.mrb[0].mxu0
      %v454 = vpop.f32.mrb[0].mxu0
      %v455 = vpop.f32.mrb[0].mxu0
      %456 = vdwg.mxu0
      %v457 = vmul.f32 %v452, 0.35355338
      %v458 = vpack.c.bf16 %v457, %v457
      %vm459 = vcmask 257024
      %460 = vst.msk [vmem:[%s344] sm:$0xf] %vm459, %v458
      %v461 = vpack.c.bf16 %v452, %v452
      %v463 = vunpack.c.l.b16 %v461
      %v464 = vpack.c.b16 %v463, %v463
      %465 = vrot.lane.b32.xlu0 %v464, 96
      %v466 = vpop.permute.xlu0 %465
      %468 = vst.msk [vmem:[%s351] sm:$0xf] %vm459, %v466
      %469 = vrot.lane.b32.xlu0 %v464, 64
      %v470 = vpop.permute.xlu0 %469
      %472 = vst.msk [vmem:[%s358] sm:$0xf] %vm459, %v470
      %p473 = scmp.lt.s32.totalorder %s23, 1
      %s474 = scalar_select %p473, %s23, 1
      %p475 = scmp.lt.s32.totalorder %s24, 0
      %s476 = scalar_select %p475, %s24, 0
      %s477 = sadd.s32 %s476, %s474
      %s478 = smul.addr %s477, 4
      %s479 = scalar_lea.vmem %s5, %s478
      %p480 = scmp.lt.s32.totalorder %s23, 1
      %s481 = scalar_select %p480, %s23, 1
      %p482 = scmp.lt.s32.totalorder %s24, 0
      %s483 = scalar_select %p482, %s24, 0
      %s484 = sadd.s32 %s483, %s481
      %s485 = smul.addr %s484, 4
      %s486 = scalar_lea.vmem %s6, %s485
      %p487 = scmp.lt.s32.totalorder %s23, 1
      %s488 = scalar_select %p487, %s23, 1
      %p489 = scmp.lt.s32.totalorder %s24, 0
      %s490 = scalar_select %p489, %s24, 0
      %s491 = sadd.s32 %s490, %s488
      %s492 = smul.addr %s491, 4
      %s493 = scalar_lea.vmem %s7, %s492
      // Predicated region
      $region41: #{pixart_block.3} parent=39 // pred_check
        %p494 = pneg %p168
      $region42: #{pixart_block.3} parent=39 // pred_check_branch
        %496 = sbr.rel (%p494) target = $region44
      $region43: #{pixart_block.3} parent=39 // pred_region
        _
      $region44: #{pixart_block.3} parent=39 // pred_fallthru
        _
      // Predicated region
      $region45: #{pixart_block.3} parent=39 // pred_check
        %p497 = pneg %p196
      $region46: #{pixart_block.3} parent=39 // pred_check_branch
        %499 = sbr.rel (%p497) target = $region48
      $region47: #{pixart_block.3} parent=39 // pred_region
        _
      $region48: #{pixart_block.3} parent=39 // pred_fallthru
        _
      // Predicated region
      $region49: #{pixart_block.3} parent=39 // pred_check
        %p500 = pneg %p224
      $region50: #{pixart_block.3} parent=39 // pred_check_branch
        %502 = sbr.rel (%p500) target = $region52
      $region51: #{pixart_block.3} parent=39 // pred_region
        _
      $region52: #{pixart_block.3} parent=39 // pred_fallthru
        _
    $region40: #{pixart_block.3} parent=5 // pred_fallthru
      _
    %p503 = scmp.le.s32.totalorder 2, %s14
    // Predicated region
    $region53: #{pixart_block.3} parent=5 // pred_check
      %p504 = pneg %p503
    $region54: #{pixart_block.3} parent=5 // pred_check_branch
      %506 = sbr.rel (%p504) target = $region56
    $region55: #{pixart_block.3} parent=5 // pred_region
      %s507 = ssub.s32 %s14, 2
      // Predicated region
      $region57: #{pixart_block.3} parent=55 // pred_check
        %p508 = pneg %p174
      $region58: #{pixart_block.3} parent=55 // pred_check_branch
        %510 = sbr.rel (%p508) target = $region60
      $region59: #{pixart_block.3} parent=55 // pred_region
        %p511 = scmp.lt.s32.totalorder %s25, 1
        %s512 = scalar_select %p511, %s25, 1
        %p513 = scmp.lt.s32.totalorder %s26, 0
        %s514 = scalar_select %p513, %s26, 0
        %s515 = sadd.s32 %s514, %s512
        %s516 = smul.addr %s515, 4
        %s517 = scalar_lea.vmem %s5, %s516
      $region60: #{pixart_block.3} parent=55 // pred_fallthru
        _
      // Predicated region
      $region61: #{pixart_block.3} parent=55 // pred_check
        %p518 = pneg %p202
      $region62: #{pixart_block.3} parent=55 // pred_check_branch
        %520 = sbr.rel (%p518) target = $region64
      $region63: #{pixart_block.3} parent=55 // pred_region
        %p521 = scmp.lt.s32.totalorder %s25, 1
        %s522 = scalar_select %p521, %s25, 1
        %p523 = scmp.lt.s32.totalorder %s26, 0
        %s524 = scalar_select %p523, %s26, 0
        %s525 = sadd.s32 %s524, %s522
        %s526 = smul.addr %s525, 4
        %s527 = scalar_lea.vmem %s6, %s526
      $region64: #{pixart_block.3} parent=55 // pred_fallthru
        _
      // Predicated region
      $region65: #{pixart_block.3} parent=55 // pred_check
        %p528 = pneg %p230
      $region66: #{pixart_block.3} parent=55 // pred_check_branch
        %530 = sbr.rel (%p528) target = $region68
      $region67: #{pixart_block.3} parent=55 // pred_region
        %p531 = scmp.lt.s32.totalorder %s25, 1
        %s532 = scalar_select %p531, %s25, 1
        %p533 = scmp.lt.s32.totalorder %s26, 0
        %s534 = scalar_select %p533, %s26, 0
        %s535 = sadd.s32 %s534, %s532
        %s536 = smul.addr %s535, 4
        %s537 = scalar_lea.vmem %s7, %s536
      $region68: #{pixart_block.3} parent=55 // pred_fallthru
        _
    $region56: #{pixart_block.3} parent=5 // pred_fallthru
      _
  $region6: #{pixart_block.3} parent=0 // loop_footer
    %s18 = sadd.s32 1, %s14
  $region7: #{pixart_block.3} parent=0 // loop_footer_branch
    %13 = sbr.rel target = $region3
  $region8: #{pixart_block.3} parent=0 // loop_exit
    _

// kernel: pixart_block.4
$region0: #{pixart_block.4}
  #allocation0 [shape = 'u32[]', space=smem, size = 0x4, offset = 0x4, fixed_abs, tag = 'smem constant byte address 0x4 - core index']
  #allocation1 [shape = 'u32[144,128]{1,0:T(1,128)}', space=vmem, size = 0x12000, scoped, tag = 'internal scratch']
  #allocation2 [shape = 'f32[8,1]{1,0:T(8,128)}', space=vmem, size = 0x1000, scoped, tag = 'scratch operand']
  #allocation3 [shape = 'f32[8,1]{1,0:T(8,128)}', space=vmem, size = 0x1000, scoped, tag = 'scratch operand']
  #allocation4 [shape = 'f32[8,8]{1,0:T(8,128)}', space=vmem, size = 0x1000, scoped, tag = 'scratch operand']
  %s0 = inlined_call_operand.vmem [shape: bf16[2,4,8,8], index: 0, kind: input, shape index: {}]
  %s1 = inlined_call_operand.vmem [shape: bf16[2,4,8,8], index: 1, kind: input, shape index: {}]
  %s2 = inlined_call_operand.vmem [shape: bf16[2,4,8,8], index: 2, kind: input, shape index: {}]
  %s3 = inlined_call_operand.vmem [shape: bf16[2,4,8,8], index: 3, kind: output, shape index: {}]
  %s4 = sld [smem:[#allocation0]]
  $region53: #{pixart_block.4} parent=0
    _
  %s6 = ssub.s32 1, %s4
  %s7 = scalar_select 0, %s6, %s4
  loop: start=0, step=1, limit=10
  $region2: #{pixart_block.4} parent=0 // loop_pre_header
    _
  $region3: #{pixart_block.4} parent=0 // loop_header
    %s9 = sphi 0, %s13
    %p10 = scmp.ge.s32.totalorder %s9, 10
    %s16 = sphi 0, %s42
    %s17 = sphi 0, %s38
    %s18 = sphi 0, %s34
    %s19 = sphi 0, %s30
    %s20 = sphi 0, %s16
    %s21 = sphi 0, %s17
    %s22 = sphi 0, %s18
    %s23 = sphi 0, %s19
    %s24 = sphi 0, %s20
    %s25 = sphi 0, %s21
    %s26 = sphi 0, %s22
    %s27 = sphi 0, %s23
    %s49 = sphi 0, %s51
    %s52 = sphi 0, %s49
    %s53 = sphi 0, %s52
    %s69 = sphi 0, %s53
    %s79 = sphi 0, %s81
    %s82 = sphi 0, %s79
    %s83 = sphi 0, %s82
    %s99 = sphi 0, %s83
    %s109 = sphi 0, %s111
    %s112 = sphi 0, %s109
    %s113 = sphi 0, %s112
    %s129 = sphi 0, %s113
    %s139 = sphi 0, %s141
    %s142 = sphi 0, %s139
    %s143 = sphi 0, %s142
    %s159 = sphi 0, %s143
  $region4: #{pixart_block.4} parent=0 // loop_header_branch
    %12 = sbr.rel (%p10) target = $region8
  $region5: #{pixart_block.4} parent=0 // loop_body
    %s14 = ssub.s32 %s9, 1
    %s15 = ssub.s32 %s9, 2
    %s28 = sadd.s32 1, %s19
    %p29 = scmp.ge.s32.totalorder %s28, 1
    %s30 = scalar_select %p29, 0, %s28
    %s31 = sadd.s32 1, %s18
    %s32 = scalar_select %p29, %s31, %s18
    %p33 = scmp.ge.s32.totalorder %s32, 1
    %s34 = scalar_select %p33, 0, %s32
    %s35 = sadd.s32 1, %s17
    %s36 = scalar_select %p33, %s35, %s17
    %p37 = scmp.ge.s32.totalorder %s36, 4
    %s38 = scalar_select %p37, 0, %s36
    %s39 = sadd.s32 1, %s16
    %s40 = scalar_select %p37, %s39, %s16
    %p41 = scmp.ge.s32.totalorder %s40, 2
    %s42 = scalar_select %p41, 0, %s40
    %s43 = ssub.s32 %s16, %s42
    %s44 = ssub.s32 %s17, %s38
    %s45 = sor.u32 %s43, %s44
    %s46 = ssub.s32 %s18, %s34
    %s47 = sor.u32 %s45, %s46
    %p48 = scmp.eq.s32.totalorder %s47, 0
    %s50 = sadd.s32 %s49, 1
    %s51 = scalar_select %p48, %s49, %s50
    %p54 = pneg %p48
    %p55 = scmp.eq.s32.totalorder %s9, 7
    %p56 = por %p54, %p55
    %p57 = scmp.ne.s32.totalorder %s49, %s52
    %p58 = scmp.eq.s32.totalorder %s9, 0
    %p59 = por %p57, %p58
    %p60 = scmp.ne.s32.totalorder %s49, %s52
    %p61 = scmp.eq.s32.totalorder %s14, 7
    %p62 = por %p60, %p61
    %p63 = scmp.ne.s32.totalorder %s52, %s53
    %p64 = scmp.eq.s32.totalorder %s14, 0
    %p65 = por %p63, %p64
    %p66 = scmp.ne.s32.totalorder %s52, %s53
    %p67 = scmp.eq.s32.totalorder %s15, 7
    %p68 = por %p66, %p67
    %p70 = scmp.ne.s32.totalorder %s53, %s69
    %p71 = scmp.eq.s32.totalorder %s15, 0
    %p72 = por %p70, %p71
    %s73 = ssub.s32 %s16, %s42
    %s74 = ssub.s32 %s17, %s38
    %s75 = sor.u32 %s73, %s74
    %s76 = ssub.s32 %s19, %s30
    %s77 = sor.u32 %s75, %s76
    %p78 = scmp.eq.s32.totalorder %s77, 0
    %s80 = sadd.s32 %s79, 1
    %s81 = scalar_select %p78, %s79, %s80
    %p84 = pneg %p78
    %p85 = scmp.eq.s32.totalorder %s9, 7
    %p86 = por %p84, %p85
    %p87 = scmp.ne.s32.totalorder %s79, %s82
    %p88 = scmp.eq.s32.totalorder %s9, 0
    %p89 = por %p87, %p88
    %p90 = scmp.ne.s32.totalorder %s79, %s82
    %p91 = scmp.eq.s32.totalorder %s14, 7
    %p92 = por %p90, %p91
    %p93 = scmp.ne.s32.totalorder %s82, %s83
    %p94 = scmp.eq.s32.totalorder %s14, 0
    %p95 = por %p93, %p94
    %p96 = scmp.ne.s32.totalorder %s82, %s83
    %p97 = scmp.eq.s32.totalorder %s15, 7
    %p98 = por %p96, %p97
    %p100 = scmp.ne.s32.totalorder %s83, %s99
    %p101 = scmp.eq.s32.totalorder %s15, 0
    %p102 = por %p100, %p101
    %s103 = ssub.s32 %s16, %s42
    %s104 = ssub.s32 %s17, %s38
    %s105 = sor.u32 %s103, %s104
    %s106 = ssub.s32 %s19, %s30
    %s107 = sor.u32 %s105, %s106
    %p108 = scmp.eq.s32.totalorder %s107, 0
    %s110 = sadd.s32 %s109, 1
    %s111 = scalar_select %p108, %s109, %s110
    %p114 = pneg %p108
    %p115 = scmp.eq.s32.totalorder %s9, 7
    %p116 = por %p114, %p115
    %p117 = scmp.ne.s32.totalorder %s109, %s112
    %p118 = scmp.eq.s32.totalorder %s9, 0
    %p119 = por %p117, %p118
    %p120 = scmp.ne.s32.totalorder %s109, %s112
    %p121 = scmp.eq.s32.totalorder %s14, 7
    %p122 = por %p120, %p121
    %p123 = scmp.ne.s32.totalorder %s112, %s113
    %p124 = scmp.eq.s32.totalorder %s14, 0
    %p125 = por %p123, %p124
    %p126 = scmp.ne.s32.totalorder %s112, %s113
    %p127 = scmp.eq.s32.totalorder %s15, 7
    %p128 = por %p126, %p127
    %p130 = scmp.ne.s32.totalorder %s113, %s129
    %p131 = scmp.eq.s32.totalorder %s15, 0
    %p132 = por %p130, %p131
    %s133 = ssub.s32 %s16, %s42
    %s134 = ssub.s32 %s17, %s38
    %s135 = sor.u32 %s133, %s134
    %s136 = ssub.s32 %s18, %s34
    %s137 = sor.u32 %s135, %s136
    %p138 = scmp.eq.s32.totalorder %s137, 0
    %s140 = sadd.s32 %s139, 1
    %s141 = scalar_select %p138, %s139, %s140
    %p144 = pneg %p138
    %p145 = scmp.eq.s32.totalorder %s9, 7
    %p146 = por %p144, %p145
    %p147 = scmp.ne.s32.totalorder %s139, %s142
    %p148 = scmp.eq.s32.totalorder %s9, 0
    %p149 = por %p147, %p148
    %p150 = scmp.ne.s32.totalorder %s139, %s142
    %p151 = scmp.eq.s32.totalorder %s14, 7
    %p152 = por %p150, %p151
    %p153 = scmp.ne.s32.totalorder %s142, %s143
    %p154 = scmp.eq.s32.totalorder %s14, 0
    %p155 = por %p153, %p154
    %p156 = scmp.ne.s32.totalorder %s142, %s143
    %p157 = scmp.eq.s32.totalorder %s15, 7
    %p158 = por %p156, %p157
    %p160 = scmp.ne.s32.totalorder %s143, %s159
    %p161 = scmp.eq.s32.totalorder %s15, 0
    %p162 = por %p160, %p161
    %p163 = scmp.le.s32.totalorder 1, %s9
    %p164 = scmp.lt.s32.totalorder %s9, 9
    %p165 = pnand %p163, %p164
    %p166 = pneg %p165
    // Predicated region
    $region9: #{pixart_block.4} parent=5 // pred_check
      _
    $region10: #{pixart_block.4} parent=5 // pred_check_branch
      %168 = sbr.rel (%p165) target = $region12
    $region11: #{pixart_block.4} parent=5 // pred_region
      %s169 = ssub.s32 %s9, 1
    $region12: #{pixart_block.4} parent=5 // pred_fallthru
      _
    %p170 = scmp.lt.s32.totalorder %s9, 8
    // Predicated region
    $region13: #{pixart_block.4} parent=5 // pred_check
      %p171 = pneg %p170
    $region14: #{pixart_block.4} parent=5 // pred_check_branch
      %173 = sbr.rel (%p171) target = $region16
    $region15: #{pixart_block.4} parent=5 // pred_region
      // Predicated region
      $region17: #{pixart_block.4} parent=15 // pred_check
        %p174 = pneg %p59
      $region18: #{pixart_block.4} parent=15 // pred_check_branch
        %176 = sbr.rel (%p174) target = $region20
      $region19: #{pixart_block.4} parent=15 // pred_region
        %p177 = scmp.lt.s32.totalorder %s16, 1
        %s178 = scalar_select %p177, %s16, 1
        %p179 = scmp.lt.s32.totalorder %s17, 3
        %s180 = scalar_select %p179, %s17, 3
        %p181 = scmp.lt.s32.totalorder %s18, 0
        %s182 = scalar_select %p181, %s18, 0
        %s183 = sadd.s32 %s182, %s180
        %s184 = smul.addr %s178, 4
        %s185 = sadd.s32 %s183, %s184
        %s186 = smul.addr %s185, 4
        %s187 = scalar_lea.vmem %s0, %s186
      $region20: #{pixart_block.4} parent=15 // pred_fallthru
        _
      // Predicated region
      $region21: #{pixart_block.4} parent=15 // pred_check
        %p188 = pneg %p89
      $region22: #{pixart_block.4} parent=15 // pred_check_branch
        %190 = sbr.rel (%p188) target = $region24
      $region23: #{pixart_block.4} parent=15 // pred_region
        %p191 = scmp.lt.s32.totalorder %s16, 1
        %s192 = scalar_select %p191, %s16, 1
        %p193 = scmp.lt.s32.totalorder %s17, 3
        %s194 = scalar_select %p193, %s17, 3
        %p195 = scmp.lt.s32.totalorder %s19, 0
        %s196 = scalar_select %p195, %s19, 0
        %s197 = sadd.s32 %s196, %s194
        %s198 = smul.addr %s192, 4
        %s199 = sadd.s32 %s197, %s198
        %s200 = smul.addr %s199, 4
        %s201 = scalar_lea.vmem %s1, %s200
      $region24: #{pixart_block.4} parent=15 // pred_fallthru
        _
      // Predicated region
      $region25: #{pixart_block.4} parent=15 // pred_check
        %p202 = pneg %p119
      $region26: #{pixart_block.4} parent=15 // pred_check_branch
        %204 = sbr.rel (%p202) target = $region28
      $region27: #{pixart_block.4} parent=15 // pred_region
        %p205 = scmp.lt.s32.totalorder %s16, 1
        %s206 = scalar_select %p205, %s16, 1
        %p207 = scmp.lt.s32.totalorder %s17, 3
        %s208 = scalar_select %p207, %s17, 3
        %p209 = scmp.lt.s32.totalorder %s19, 0
        %s210 = scalar_select %p209, %s19, 0
        %s211 = sadd.s32 %s210, %s208
        %s212 = smul.addr %s206, 4
        %s213 = sadd.s32 %s211, %s212
        %s214 = smul.addr %s213, 4
        %s215 = scalar_lea.vmem %s2, %s214
      $region28: #{pixart_block.4} parent=15 // pred_fallthru
        _
    $region16: #{pixart_block.4} parent=5 // pred_fallthru
      _
    %p216 = scmp.le.s32.totalorder 1, %s9
    %p217 = scmp.lt.s32.totalorder %s9, 9
    %p218 = pnand %p216, %p217
    %p219 = pneg %p218
    // Predicated region
    $region29: #{pixart_block.4} parent=5 // pred_check
      _
    $region30: #{pixart_block.4} parent=5 // pred_check_branch
      %221 = sbr.rel (%p218) target = $region32
    $region31: #{pixart_block.4} parent=5 // pred_region
      %s222 = ssub.s32 %s9, 1
      %p223 = scmp.lt.s32.totalorder %s20, 1
      %s224 = scalar_select %p223, %s20, 1
      %p225 = scmp.lt.s32.totalorder %s21, 3
      %s226 = scalar_select %p225, %s21, 3
      %p227 = scmp.lt.s32.totalorder %s22, 0
      %s228 = scalar_select %p227, %s22, 0
      %s229 = sadd.s32 %s228, %s226
      %s230 = smul.addr %s224, 4
      %s231 = sadd.s32 %s229, %s230
      %s232 = smul.addr %s231, 4
      %s233 = scalar_lea.vmem %s0, %s232
      %p234 = pneg %p65
      %p235 = pneg %p62
      %p236 = scmp.lt.s32.totalorder %s20, 1
      %s237 = scalar_select %p236, %s20, 1
      %p238 = scmp.lt.s32.totalorder %s21, 3
      %s239 = scalar_select %p238, %s21, 3
      %p240 = scmp.lt.s32.totalorder %s23, 0
      %s241 = scalar_select %p240, %s23, 0
      %s242 = sadd.s32 %s241, %s239
      %s243 = smul.addr %s237, 4
      %s244 = sadd.s32 %s242, %s243
      %s245 = smul.addr %s244, 4
      %s246 = scalar_lea.vmem %s1, %s245
      %p247 = pneg %p95
      %p248 = pneg %p92
      %p249 = scmp.lt.s32.totalorder %s20, 1
      %s250 = scalar_select %p249, %s20, 1
      %p251 = scmp.lt.s32.totalorder %s21, 3
      %s252 = scalar_select %p251, %s21, 3
      %p253 = scmp.lt.s32.totalorder %s23, 0
      %s254 = scalar_select %p253, %s23, 0
      %s255 = sadd.s32 %s254, %s252
      %s256 = smul.addr %s250, 4
      %s257 = sadd.s32 %s255, %s256
      %s258 = smul.addr %s257, 4
      %s259 = scalar_lea.vmem %s2, %s258
      %p260 = pneg %p125
      %p261 = pneg %p122
      %p262 = pneg %p155
      %p263 = pneg %p152
      %p264 = scmp.lt.s32.totalorder %s20, 1
      %s265 = scalar_select %p264, %s20, 1
      %p266 = scmp.lt.s32.totalorder %s21, 3
      %s267 = scalar_select %p266, %s21, 3
      %p268 = scmp.lt.s32.totalorder %s22, 0
      %s269 = scalar_select %p268, %s22, 0
      %s270 = sadd.s32 %s269, %s267
      %s271 = smul.addr %s265, 4
      %s272 = sadd.s32 %s270, %s271
      %s273 = smul.addr %s272, 4
      %s274 = scalar_lea.vmem %s3, %s273
      %p275 = scmp.lt.s32.totalorder %s20, 1
      %s276 = scalar_select %p275, %s20, 1
      %p277 = scmp.lt.s32.totalorder %s21, 3
      %s278 = scalar_select %p277, %s21, 3
      %p279 = scmp.lt.s32.totalorder %s22, 0
      %s280 = scalar_select %p279, %s22, 0
      %s281 = sadd.s32 %s280, %s278
      %s282 = smul.addr %s276, 4
      %s283 = sadd.s32 %s281, %s282
      %s284 = smul.addr %s283, 4
      %s285 = scalar_lea.vmem %s0, %s284
      %p286 = scmp.lt.s32.totalorder %s20, 1
      %s287 = scalar_select %p286, %s20, 1
      %p288 = scmp.lt.s32.totalorder %s21, 3
      %s289 = scalar_select %p288, %s21, 3
      %p290 = scmp.lt.s32.totalorder %s23, 0
      %s291 = scalar_select %p290, %s23, 0
      %s292 = sadd.s32 %s291, %s289
      %s293 = smul.addr %s287, 4
      %s294 = sadd.s32 %s292, %s293
      %s295 = smul.addr %s294, 4
      %s296 = scalar_lea.vmem %s1, %s295
      %p297 = scmp.lt.s32.totalorder %s20, 1
      %s298 = scalar_select %p297, %s20, 1
      %p299 = scmp.lt.s32.totalorder %s21, 3
      %s300 = scalar_select %p299, %s21, 3
      %p301 = scmp.lt.s32.totalorder %s23, 0
      %s302 = scalar_select %p301, %s23, 0
      %s303 = sadd.s32 %s302, %s300
      %s304 = smul.addr %s298, 4
      %s305 = sadd.s32 %s303, %s304
      %s306 = smul.addr %s305, 4
      %s307 = scalar_lea.vmem %s2, %s306
      %p308 = scmp.lt.s32.totalorder %s20, 1
      %s309 = scalar_select %p308, %s20, 1
      %p310 = scmp.lt.s32.totalorder %s21, 3
      %s311 = scalar_select %p310, %s21, 3
      %p312 = scmp.lt.s32.totalorder %s22, 0
      %s313 = scalar_select %p312, %s22, 0
      %s314 = sadd.s32 %s313, %s311
      %s315 = smul.addr %s309, 4
      %s316 = sadd.s32 %s314, %s315
      %s317 = smul.addr %s316, 4
      %s318 = scalar_lea.vmem %s3, %s317
      %p320 = scmp.eq.s32.totalorder %s23, 0
      // Predicated region
      $region33: #{pixart_block.4} parent=31 // pred_check
        %p321 = pneg %p320
      $region34: #{pixart_block.4} parent=31 // pred_check_branch
        %323 = sbr.rel (%p321) target = $region36
      $region35: #{pixart_block.4} parent=31 // pred_region
        %vm324 = vcmask 7168
        %325 = vst.msk [vmem:[#allocation2] sm:$0xff] %vm324, -inf
        %326 = vst.msk [vmem:[#allocation3] sm:$0xff] %vm324, 0.0
        %vm327 = vcmask 64512
        %328 = vst.msk [vmem:[#allocation4] sm:$0xff] %vm327, 0.0
      $region36: #{pixart_block.4} parent=31 // pred_fallthru
        _
      %v329 = vld [vmem:[%s285] sm:$0xf]
      %v330 = vld [vmem:[%s296] sm:$0xf]
      %v331 = vld [vmem:[%s307] sm:$0xf]
      %vm332 = vcmask 64512
      %v334 = vsel %vm332, %v329, 0
      %v337 = vsel %vm332, %v330, 0
      %339 = vmatprep.subr.bf16.mxu0 0
      %340 = vmatpush1.bf16.xpose.msra.mxu0 %v337
      %341 = vmatprep.subr.bf16.mxu0 0
      %342 = vmatpush1.bf16.xpose.msra.mxu0 0
      %343 = vmatprep.subr.bf16.mxu0 0
      %344 = vmatpush1.bf16.xpose.msra.mxu0 0
      %345 = vmatprep.subr.bf16.mxu0 0
      %346 = vmatpush1.bf16.xpose.msra.mxu0 0
      %347 = vmatprep.subr.bf16.mxu0 0
      %348 = vmatpush1.bf16.xpose.msra.mxu0 0
      %349 = vmatprep.subr.bf16.mxu0 0
      %350 = vmatpush1.bf16.xpose.msra.mxu0 0
      %351 = vmatprep.subr.bf16.mxu0 0
      %352 = vmatpush1.bf16.xpose.msra.mxu0 0
      %353 = vmatprep.subr.bf16.mxu0 0
      %354 = vmatpush1.bf16.xpose.msra.mxu0 0
      %355 = vmatprep.subr.bf16.mxu0 0
      %356 = vmatpush1.bf16.xpose.msra.mxu0 0
      %357 = vmatprep.subr.bf16.mxu0 0
      %358 = vmatpush1.bf16.xpose.msra.mxu0 0
      %359 = vmatprep.subr.bf16.mxu0 0
      %360 = vmatpush1.bf16.xpose.msra.mxu0 0
      %361 = vmatprep.subr.bf16.mxu0 0
      %362 = vmatpush1.bf16.xpose.msra.mxu0 0
      %363 = vmatprep.subr.bf16.mxu0 0
      %364 = vmatpush1.bf16.xpose.msra.mxu0 0
      %365 = vmatprep.subr.bf16.mxu0 0
      %366 = vmatpush1.bf16.xpose.msra.mxu0 0
      %367 = vmatprep.subr.bf16.mxu0 0
      %368 = vmatpush1.bf16.xpose.msra.mxu0 0
      %369 = vmatprep.subr.bf16.mxu0 0
      %370 = vmatpush1.bf16.xpose.msra.mxu0 0
      %371 = vmatprep.mubr.bf16.mxu0 0
      %372 = vmatmul.mubr.bf16.gmra.mrb[0].mxu0 %v334
      %v373 = vpop.f32.mrb[0].mxu0
      %v374 = vadd.f32 0.0, %v373
      %v375 = vpop.f32.mrb[0].mxu0
      %v376 = vpop.f32.mrb[0].mxu0
      %v377 = vpop.f32.mrb[0].mxu0
      %378 = vdwg.mxu0
      %v379 = vld [vmem:[#allocation2] sm:$0xff]
      %v380 = vsel %vm332, %v374, -inf
      %381 = vmax.xlane.f32.xlu0 %v380
      %v382 = vpop.xlane.xlu0 %381
      %v383 = vmax.f32 %v379, %v382
      %v384 = vsub.f32 %v379, %v383
      %v385 = vmul.f32 %v384, 1.442695
      %v386 = vpow.pop %v385
      %388 = vset.pattern.permute.xlu0 0
      %389 = vperm.xlu0 %388, %v383
      %v390 = vpop.permute.xlu0 %389
      %v392 = vsub.f32 %v374, %v390
      %v393 = vmul.f32 %v392, 1.442695
      %v394 = vpow.pop %v393
      %v395 = vld [vmem:[#allocation3] sm:$0xff]
      %v396 = vmul.f32 %v386, %v395
      %v397 = vsel %vm332, %v394, 0.0
      %398 = vadd.xlane.f32.xlu0 %v397
      %v399 = vpop.xlane.xlu0 %398
      %v400 = vadd.f32 %v396, %v399
      %vm401 = vcmask 7168
      %402 = vst.msk [vmem:[#allocation3] sm:$0xff] %vm401, %v400
      %v403 = vld [vmem:[#allocation4] sm:$0xff]
      %405 = vset.pattern.permute.xlu0 0
      %406 = vperm.xlu0 %405, %v386
      %v407 = vpop.permute.xlu0 %406
      %v409 = vmul.f32 %v407, %v403
      %v410 = vpack.c.bf16 %v394, %v394
      %v412 = vsel %vm332, %v410, 0
      %vm414 = vcmask 1043456
      %v416 = vsel %vm414, %v331, 0
      %418 = vmatprep.subr.bf16.mxu0 0
      %419 = vmatpush1.bf16.msra.mxu0 %v416
      %420 = vmatprep.subr.bf16.mxu0 0
      %421 = vmatpush1.bf16.msra.mxu0 0
      %422 = vmatprep.subr.bf16.mxu0 0
      %423 = vmatpush1.bf16.msra.mxu0 0
      %424 = vmatprep.subr.bf16.mxu0 0
      %425 = vmatpush1.bf16.msra.mxu0 0
      %426 = vmatprep.subr.bf16.mxu0 0
      %427 = vmatpush1.bf16.msra.mxu0 0
      %428 = vmatprep.subr.bf16.mxu0 0
      %429 = vmatpush1.bf16.msra.mxu0 0
      %430 = vmatprep.subr.bf16.mxu0 0
      %431 = vmatpush1.bf16.msra.mxu0 0
      %432 = vmatprep.subr.bf16.mxu0 0
      %433 = vmatpush1.bf16.msra.mxu0 0
      %434 = vmatprep.subr.bf16.mxu0 0
      %435 = vmatpush1.bf16.msra.mxu0 0
      %436 = vmatprep.subr.bf16.mxu0 0
      %437 = vmatpush1.bf16.msra.mxu0 0
      %438 = vmatprep.subr.bf16.mxu0 0
      %439 = vmatpush1.bf16.msra.mxu0 0
      %440 = vmatprep.subr.bf16.mxu0 0
      %441 = vmatpush1.bf16.msra.mxu0 0
      %442 = vmatprep.subr.bf16.mxu0 0
      %443 = vmatpush1.bf16.msra.mxu0 0
      %444 = vmatprep.subr.bf16.mxu0 0
      %445 = vmatpush1.bf16.msra.mxu0 0
      %446 = vmatprep.subr.bf16.mxu0 0
      %447 = vmatpush1.bf16.msra.mxu0 0
      %448 = vmatprep.subr.bf16.mxu0 0
      %449 = vmatpush1.bf16.msra.mxu0 0
      %450 = vmatprep.mubr.bf16.mxu0 0
      %451 = vmatmul.mubr.bf16.gmra.mrb[0].mxu0 %v412
      %v452 = vpop.f32.mrb[0].mxu0
      %v453 = vadd.f32 0.0, %v452
      %v454 = vpop.f32.mrb[0].mxu0
      %v455 = vpop.f32.mrb[0].mxu0
      %v456 = vpop.f32.mrb[0].mxu0
      %457 = vdwg.mxu0
      %v458 = vadd.f32 %v409, %v453
      %459 = vst.msk [vmem:[#allocation4] sm:$0xff] %vm332, %v458
      %460 = vst.msk [vmem:[#allocation2] sm:$0xff] %vm401, %v383
      // Predicated region
      $region37: #{pixart_block.4} parent=31 // pred_check
        %p461 = pneg %p320
      $region38: #{pixart_block.4} parent=31 // pred_check_branch
        %463 = sbr.rel (%p461) target = $region40
      $region39: #{pixart_block.4} parent=31 // pred_region
        %v464 = vld [vmem:[#allocation3] sm:$0xff]
        %v465 = vrcp.pop %v464
        %v466 = vld [vmem:[#allocation4] sm:$0xff]
        %468 = vset.pattern.permute.xlu0 0
        %469 = vperm.xlu0 %468, %v465
        %v470 = vpop.permute.xlu0 %469
        %v472 = vmul.f32 %v466, %v470
        %v473 = vpack.c.bf16 %v472, %v472
        %vm474 = vcmask 60416
        %475 = vst.msk [vmem:[%s318] sm:$0xf] %vm474, %v473
      $region40: #{pixart_block.4} parent=31 // pred_fallthru
        _
      %p476 = scmp.lt.s32.totalorder %s20, 1
      %s477 = scalar_select %p476, %s20, 1
      %p478 = scmp.lt.s32.totalorder %s21, 3
      %s479 = scalar_select %p478, %s21, 3
      %p480 = scmp.lt.s32.totalorder %s22, 0
      %s481 = scalar_select %p480, %s22, 0
      %s482 = sadd.s32 %s481, %s479
      %s483 = smul.addr %s477, 4
      %s484 = sadd.s32 %s482, %s483
      %s485 = smul.addr %s484, 4
      %s486 = scalar_lea.vmem %s3, %s485
      // Predicated region
      $region41: #{pixart_block.4} parent=31 // pred_check
        %p487 = pneg %p152
      $region42: #{pixart_block.4} parent=31 // pred_check_branch
        %489 = sbr.rel (%p487) target = $region44
      $region43: #{pixart_block.4} parent=31 // pred_region
        _
      $region44: #{pixart_block.4} parent=31 // pred_fallthru
        _
    $region32: #{pixart_block.4} parent=5 // pred_fallthru
      _
    %p490 = scmp.le.s32.totalorder 2, %s9
    // Predicated region
    $region45: #{pixart_block.4} parent=5 // pred_check
      %p491 = pneg %p490
    $region46: #{pixart_block.4} parent=5 // pred_check_branch
      %493 = sbr.rel (%p491) target = $region48
    $region47: #{pixart_block.4} parent=5 // pred_region
      %s494 = ssub.s32 %s9, 2
      // Predicated region
      $region49: #{pixart_block.4} parent=47 // pred_check
        %p495 = pneg %p158
      $region50: #{pixart_block.4} parent=47 // pred_check_branch
        %497 = sbr.rel (%p495) target = $region52
      $region51: #{pixart_block.4} parent=47 // pred_region
        %p498 = scmp.lt.s32.totalorder %s24, 1
        %s499 = scalar_select %p498, %s24, 1
        %p500 = scmp.lt.s32.totalorder %s25, 3
        %s501 = scalar_select %p500, %s25, 3
        %p502 = scmp.lt.s32.totalorder %s26, 0
        %s503 = scalar_select %p502, %s26, 0
        %s504 = sadd.s32 %s503, %s501
        %s505 = smul.addr %s499, 4
        %s506 = sadd.s32 %s504, %s505
        %s507 = smul.addr %s506, 4
        %s508 = scalar_lea.vmem %s3, %s507
      $region52: #{pixart_block.4} parent=47 // pred_fallthru
        _
    $region48: #{pixart_block.4} parent=5 // pred_fallthru
      _
  $region6: #{pixart_block.4} parent=0 // loop_footer
    %s13 = sadd.s32 1, %s9
  $region7: #{pixart_block.4} parent=0 // loop_footer_branch
    %8 = sbr.rel target = $region3
  $region8: #{pixart_block.4} parent=0 // loop_exit
    _

// kernel: pixart_block.5
$region0: #{pixart_block.5}
  #allocation0 [shape = 'u32[]', space=smem, size = 0x4, offset = 0x4, fixed_abs, tag = 'smem constant byte address 0x4 - core index']
  #allocation1 [shape = 'u32[144,128]{1,0:T(1,128)}', space=vmem, size = 0x12000, scoped, tag = 'internal scratch']
  %s0 = inlined_call_operand.vmem [shape: f32[2,8,32], index: 0, kind: input, shape index: {}]
  %s1 = inlined_call_operand.vmem [shape: bf16[2,8,32], index: 1, kind: input, shape index: {}]
  %s2 = inlined_call_operand.vmem [shape: f32[2,6,32], index: 2, kind: input, shape index: {}]
  %s3 = inlined_call_operand.vmem [shape: f32[6,32], index: 3, kind: input, shape index: {}]
  %s4 = inlined_call_operand.vmem [shape: bf16[32,32], index: 4, kind: input, shape index: {}]
  %s5 = inlined_call_operand.vmem [shape: f32[1,32], index: 5, kind: input, shape index: {}]
  %s6 = inlined_call_operand.vmem [shape: bf16[32,128], index: 6, kind: input, shape index: {}]
  %s7 = inlined_call_operand.vmem [shape: f32[1,128], index: 7, kind: input, shape index: {}]
  %s8 = inlined_call_operand.vmem [shape: bf16[128,32], index: 8, kind: input, shape index: {}]
  %s9 = inlined_call_operand.vmem [shape: f32[1,32], index: 9, kind: input, shape index: {}]
  %s10 = inlined_call_operand.hbm [shape: f32[2,8,32], index: 10, kind: output, shape index: {}]
  %s11 = sld [smem:[#allocation0]]
  $region73: #{pixart_block.5} parent=0
    _
  %s13 = ssub.s32 1, %s11
  %s14 = scalar_select 0, %s13, %s11
  $region1: #{pixart_block.5} parent=0
    #allocation2 [shape = 'u8[8192]{0}', space=vmem, size = 0x2000, scoped, tag = 'output window, operand 0']
    #allocation3 [shape = 's32[2]{0}', space=sflag, size = 0x8, scoped, tag = 'scoped memory for pixart_block.5']
    %15 = vsyncpa [#allocation3], 0
    %s16 = scalar_lea.sflag [#allocation3], 1
    %17 = vsyncpa %s16, 0
    loop: start=0, step=1, limit=4
    $region2: #{pixart_block.5} parent=1 // loop_pre_header
      _
    $region3: #{pixart_block.5} parent=1 // loop_header
      %s19 = sphi 0, %s23
      %p20 = scmp.ge.s32.totalorder %s19, 4
      %s26 = sphi 0, %s38
      %s27 = sphi 0, %s34
      %s28 = sphi 0, %s26
      %s29 = sphi 0, %s27
      %s30 = sphi 0, %s28
      %s31 = sphi 0, %s29
      %s43 = sphi 0, %s45
      %s46 = sphi 0, %s43
      %s47 = sphi 0, %s46
      %s63 = sphi 0, %s47
      %s71 = sphi 0, %s73
      %s74 = sphi 0, %s71
      %s75 = sphi 0, %s74
      %s91 = sphi 0, %s75
      %s97 = sphi 0, %s99
      %s100 = sphi 0, %s97
      %s101 = sphi 0, %s100
      %s117 = sphi 0, %s101
      %s121 = sphi 0, %s121
      %s123 = sphi 0, %s121
      %s124 = sphi 0, %s123
      %s138 = sphi 0, %s124
      %s142 = sphi 0, %s142
      %s144 = sphi 0, %s142
      %s145 = sphi 0, %s144
      %s159 = sphi 0, %s145
      %s163 = sphi 0, %s163
      %s165 = sphi 0, %s163
      %s166 = sphi 0, %s165
      %s180 = sphi 0, %s166
      %s184 = sphi 0, %s184
      %s186 = sphi 0, %s184
      %s187 = sphi 0, %s186
      %s201 = sphi 0, %s187
      %s205 = sphi 0, %s205
      %s207 = sphi 0, %s205
      %s208 = sphi 0, %s207
      %s222 = sphi 0, %s208
      %s226 = sphi 0, %s226
      %s228 = sphi 0, %s226
      %s229 = sphi 0, %s228
      %s243 = sphi 0, %s229
      %s247 = sphi 0, %s247
      %s249 = sphi 0, %s247
      %s250 = sphi 0, %s249
      %s264 = sphi 0, %s250
      %s272 = sphi 0, %s274
      %s275 = sphi 0, %s272
      %s276 = sphi 0, %s275
      %s292 = sphi 0, %s276
    $region4: #{pixart_block.5} parent=1 // loop_header_branch
      %22 = sbr.rel (%p20) target = $region8
    $region5: #{pixart_block.5} parent=1 // loop_body
      %s24 = ssub.s32 %s19, 1
      %s25 = ssub.s32 %s19, 2
      %s32 = sadd.s32 1, %s27
      %p33 = scmp.ge.s32.totalorder %s32, 1
      %s34 = scalar_select %p33, 0, %s32
      %s35 = sadd.s32 1, %s26
      %s36 = scalar_select %p33, %s35, %s26
      %p37 = scmp.ge.s32.totalorder %s36, 2
      %s38 = scalar_select %p37, 0, %s36
      %s39 = ssub.s32 %s26, %s38
      %s40 = ssub.s32 %s27, %s34
      %s41 = sor.u32 %s39, %s40
      %p42 = scmp.eq.s32.totalorder %s41, 0
      %s44 = sadd.s32 %s43, 1
      %s45 = scalar_select %p42, %s43, %s44
      %p48 = pneg %p42
      %p49 = scmp.eq.s32.totalorder %s19, 1
      %p50 = por %p48, %p49
      %p51 = scmp.ne.s32.totalorder %s43, %s46
      %p52 = scmp.eq.s32.totalorder %s19, 0
      %p53 = por %p51, %p52
      %p54 = scmp.ne.s32.totalorder %s43, %s46
      %p55 = scmp.eq.s32.totalorder %s24, 1
      %p56 = por %p54, %p55
      %p57 = scmp.ne.s32.totalorder %s46, %s47
      %p58 = scmp.eq.s32.totalorder %s24, 0
      %p59 = por %p57, %p58
      %p60 = scmp.ne.s32.totalorder %s46, %s47
      %p61 = scmp.eq.s32.totalorder %s25, 1
      %p62 = por %p60, %p61
      %p64 = scmp.ne.s32.totalorder %s47, %s63
      %p65 = scmp.eq.s32.totalorder %s25, 0
      %p66 = por %p64, %p65
      %s67 = ssub.s32 %s26, %s38
      %s68 = ssub.s32 %s27, %s34
      %s69 = sor.u32 %s67, %s68
      %p70 = scmp.eq.s32.totalorder %s69, 0
      %s72 = sadd.s32 %s71, 1
      %s73 = scalar_select %p70, %s71, %s72
      %p76 = pneg %p70
      %p77 = scmp.eq.s32.totalorder %s19, 1
      %p78 = por %p76, %p77
      %p79 = scmp.ne.s32.totalorder %s71, %s74
      %p80 = scmp.eq.s32.totalorder %s19, 0
      %p81 = por %p79, %p80
      %p82 = scmp.ne.s32.totalorder %s71, %s74
      %p83 = scmp.eq.s32.totalorder %s24, 1
      %p84 = por %p82, %p83
      %p85 = scmp.ne.s32.totalorder %s74, %s75
      %p86 = scmp.eq.s32.totalorder %s24, 0
      %p87 = por %p85, %p86
      %p88 = scmp.ne.s32.totalorder %s74, %s75
      %p89 = scmp.eq.s32.totalorder %s25, 1
      %p90 = por %p88, %p89
      %p92 = scmp.ne.s32.totalorder %s75, %s91
      %p93 = scmp.eq.s32.totalorder %s25, 0
      %p94 = por %p92, %p93
      %s95 = ssub.s32 %s26, %s38
      %p96 = scmp.eq.s32.totalorder %s95, 0
      %s98 = sadd.s32 %s97, 1
      %s99 = scalar_select %p96, %s97, %s98
      %p102 = pneg %p96
      %p103 = scmp.eq.s32.totalorder %s19, 1
      %p104 = por %p102, %p103
      %p105 = scmp.ne.s32.totalorder %s97, %s100
      %p106 = scmp.eq.s32.totalorder %s19, 0
      %p107 = por %p105, %p106
      %p108 = scmp.ne.s32.totalorder %s97, %s100
      %p109 = scmp.eq.s32.totalorder %s24, 1
      %p110 = por %p108, %p109
      %p111 = scmp.ne.s32.totalorder %s100, %s101
      %p112 = scmp.eq.s32.totalorder %s24, 0
      %p113 = por %p111, %p112
      %p114 = scmp.ne.s32.totalorder %s100, %s101
      %p115 = scmp.eq.s32.totalorder %s25, 1
      %p116 = por %p114, %p115
      %p118 = scmp.ne.s32.totalorder %s101, %s117
      %p119 = scmp.eq.s32.totalorder %s25, 0
      %p120 = por %p118, %p119
      %s122 = sadd.s32 %s121, 1
      %p125 = scmp.eq.s32.totalorder %s19, 1
      %p126 = scmp.ne.s32.totalorder %s121, %s123
      %p127 = scmp.eq.s32.totalorder %s19, 0
      %p128 = por %p126, %p127
      %p129 = scmp.ne.s32.totalorder %s121, %s123
      %p130 = scmp.eq.s32.totalorder %s24, 1
      %p131 = por %p129, %p130
      %p132 = scmp.ne.s32.totalorder %s123, %s124
      %p133 = scmp.eq.s32.totalorder %s24, 0
      %p134 = por %p132, %p133
      %p135 = scmp.ne.s32.totalorder %s123, %s124
      %p136 = scmp.eq.s32.totalorder %s25, 1
      %p137 = por %p135, %p136
      %p139 = scmp.ne.s32.totalorder %s124, %s138
      %p140 = scmp.eq.s32.totalorder %s25, 0
      %p141 = por %p139, %p140
      %s143 = sadd.s32 %s142, 1
      %p146 = scmp.eq.s32.totalorder %s19, 1
      %p147 = scmp.ne.s32.totalorder %s142, %s144
      %p148 = scmp.eq.s32.totalorder %s19, 0
      %p149 = por %p147, %p148
      %p150 = scmp.ne.s32.totalorder %s142, %s144
      %p151 = scmp.eq.s32.totalorder %s24, 1
      %p152 = por %p150, %p151
      %p153 = scmp.ne.s32.totalorder %s144, %s145
      %p154 = scmp.eq.s32.totalorder %s24, 0
      %p155 = por %p153, %p154
      %p156 = scmp.ne.s32.totalorder %s144, %s145
      %p157 = scmp.eq.s32.totalorder %s25, 1
      %p158 = por %p156, %p157
      %p160 = scmp.ne.s32.totalorder %s145, %s159
      %p161 = scmp.eq.s32.totalorder %s25, 0
      %p162 = por %p160, %p161
      %s164 = sadd.s32 %s163, 1
      %p167 = scmp.eq.s32.totalorder %s19, 1
      %p168 = scmp.ne.s32.totalorder %s163, %s165
      %p169 = scmp.eq.s32.totalorder %s19, 0
      %p170 = por %p168, %p169
      %p171 = scmp.ne.s32.totalorder %s163, %s165
      %p172 = scmp.eq.s32.totalorder %s24, 1
      %p173 = por %p171, %p172
      %p174 = scmp.ne.s32.totalorder %s165, %s166
      %p175 = scmp.eq.s32.totalorder %s24, 0
      %p176 = por %p174, %p175
      %p177 = scmp.ne.s32.totalorder %s165, %s166
      %p178 = scmp.eq.s32.totalorder %s25, 1
      %p179 = por %p177, %p178
      %p181 = scmp.ne.s32.totalorder %s166, %s180
      %p182 = scmp.eq.s32.totalorder %s25, 0
      %p183 = por %p181, %p182
      %s185 = sadd.s32 %s184, 1
      %p188 = scmp.eq.s32.totalorder %s19, 1
      %p189 = scmp.ne.s32.totalorder %s184, %s186
      %p190 = scmp.eq.s32.totalorder %s19, 0
      %p191 = por %p189, %p190
      %p192 = scmp.ne.s32.totalorder %s184, %s186
      %p193 = scmp.eq.s32.totalorder %s24, 1
      %p194 = por %p192, %p193
      %p195 = scmp.ne.s32.totalorder %s186, %s187
      %p196 = scmp.eq.s32.totalorder %s24, 0
      %p197 = por %p195, %p196
      %p198 = scmp.ne.s32.totalorder %s186, %s187
      %p199 = scmp.eq.s32.totalorder %s25, 1
      %p200 = por %p198, %p199
      %p202 = scmp.ne.s32.totalorder %s187, %s201
      %p203 = scmp.eq.s32.totalorder %s25, 0
      %p204 = por %p202, %p203
      %s206 = sadd.s32 %s205, 1
      %p209 = scmp.eq.s32.totalorder %s19, 1
      %p210 = scmp.ne.s32.totalorder %s205, %s207
      %p211 = scmp.eq.s32.totalorder %s19, 0
      %p212 = por %p210, %p211
      %p213 = scmp.ne.s32.totalorder %s205, %s207
      %p214 = scmp.eq.s32.totalorder %s24, 1
      %p215 = por %p213, %p214
      %p216 = scmp.ne.s32.totalorder %s207, %s208
      %p217 = scmp.eq.s32.totalorder %s24, 0
      %p218 = por %p216, %p217
      %p219 = scmp.ne.s32.totalorder %s207, %s208
      %p220 = scmp.eq.s32.totalorder %s25, 1
      %p221 = por %p219, %p220
      %p223 = scmp.ne.s32.totalorder %s208, %s222
      %p224 = scmp.eq.s32.totalorder %s25, 0
      %p225 = por %p223, %p224
      %s227 = sadd.s32 %s226, 1
      %p230 = scmp.eq.s32.totalorder %s19, 1
      %p231 = scmp.ne.s32.totalorder %s226, %s228
      %p232 = scmp.eq.s32.totalorder %s19, 0
      %p233 = por %p231, %p232
      %p234 = scmp.ne.s32.totalorder %s226, %s228
      %p235 = scmp.eq.s32.totalorder %s24, 1
      %p236 = por %p234, %p235
      %p237 = scmp.ne.s32.totalorder %s228, %s229
      %p238 = scmp.eq.s32.totalorder %s24, 0
      %p239 = por %p237, %p238
      %p240 = scmp.ne.s32.totalorder %s228, %s229
      %p241 = scmp.eq.s32.totalorder %s25, 1
      %p242 = por %p240, %p241
      %p244 = scmp.ne.s32.totalorder %s229, %s243
      %p245 = scmp.eq.s32.totalorder %s25, 0
      %p246 = por %p244, %p245
      %s248 = sadd.s32 %s247, 1
      %p251 = scmp.eq.s32.totalorder %s19, 1
      %p252 = scmp.ne.s32.totalorder %s247, %s249
      %p253 = scmp.eq.s32.totalorder %s19, 0
      %p254 = por %p252, %p253
      %p255 = scmp.ne.s32.totalorder %s247, %s249
      %p256 = scmp.eq.s32.totalorder %s24, 1
      %p257 = por %p255, %p256
      %p258 = scmp.ne.s32.totalorder %s249, %s250
      %p259 = scmp.eq.s32.totalorder %s24, 0
      %p260 = por %p258, %p259
      %p261 = scmp.ne.s32.totalorder %s249, %s250
      %p262 = scmp.eq.s32.totalorder %s25, 1
      %p263 = por %p261, %p262
      %p265 = scmp.ne.s32.totalorder %s250, %s264
      %p266 = scmp.eq.s32.totalorder %s25, 0
      %p267 = por %p265, %p266
      %s268 = ssub.s32 %s26, %s38
      %s269 = ssub.s32 %s27, %s34
      %s270 = sor.u32 %s268, %s269
      %p271 = scmp.eq.s32.totalorder %s270, 0
      %s273 = sadd.s32 %s272, 1
      %s274 = scalar_select %p271, %s272, %s273
      %p277 = pneg %p271
      %p278 = scmp.eq.s32.totalorder %s19, 1
      %p279 = por %p277, %p278
      %p280 = scmp.ne.s32.totalorder %s272, %s275
      %p281 = scmp.eq.s32.totalorder %s19, 0
      %p282 = por %p280, %p281
      %p283 = scmp.ne.s32.totalorder %s272, %s275
      %p284 = scmp.eq.s32.totalorder %s24, 1
      %p285 = por %p283, %p284
      %p286 = scmp.ne.s32.totalorder %s275, %s276
      %p287 = scmp.eq.s32.totalorder %s24, 0
      %p288 = por %p286, %p287
      %p289 = scmp.ne.s32.totalorder %s275, %s276
      %p290 = scmp.eq.s32.totalorder %s25, 1
      %p291 = por %p289, %p290
      %p293 = scmp.ne.s32.totalorder %s276, %s292
      %p294 = scmp.eq.s32.totalorder %s25, 0
      %p295 = por %p293, %p294
      %p296 = scmp.le.s32.totalorder 1, %s19
      %p297 = scmp.lt.s32.totalorder %s19, 3
      %p298 = pnand %p296, %p297
      %p299 = pneg %p298
      // Predicated region
      $region9: #{pixart_block.5} parent=5 // pred_check
        _
      $region10: #{pixart_block.5} parent=5 // pred_check_branch
        %301 = sbr.rel (%p298) target = $region12
      $region11: #{pixart_block.5} parent=5 // pred_region
        %s302 = ssub.s32 %s19, 1
        // Predicated region
        $region13: #{pixart_block.5} parent=11 // pred_check
          %p303 = pneg %p134
        $region14: #{pixart_block.5} parent=11 // pred_check_branch
          %305 = sbr.rel (%p303) target = $region16
        $region15: #{pixart_block.5} parent=11 // pred_region
          _
        $region16: #{pixart_block.5} parent=11 // pred_fallthru
          _
        // Predicated region
        $region17: #{pixart_block.5} parent=11 // pred_check
          %p306 = pneg %p155
        $region18: #{pixart_block.5} parent=11 // pred_check_branch
          %308 = sbr.rel (%p306) target = $region20
        $region19: #{pixart_block.5} parent=11 // pred_region
          _
        $region20: #{pixart_block.5} parent=11 // pred_fallthru
          _
        // Predicated region
        $region21: #{pixart_block.5} parent=11 // pred_check
          %p309 = pneg %p176
        $region22: #{pixart_block.5} parent=11 // pred_check_branch
          %311 = sbr.rel (%p309) target = $region24
        $region23: #{pixart_block.5} parent=11 // pred_region
          _
        $region24: #{pixart_block.5} parent=11 // pred_fallthru
          _
        // Predicated region
        $region25: #{pixart_block.5} parent=11 // pred_check
          %p312 = pneg %p197
        $region26: #{pixart_block.5} parent=11 // pred_check_branch
          %314 = sbr.rel (%p312) target = $region28
        $region27: #{pixart_block.5} parent=11 // pred_region
          _
        $region28: #{pixart_block.5} parent=11 // pred_fallthru
          _
        // Predicated region
        $region29: #{pixart_block.5} parent=11 // pred_check
          %p315 = pneg %p218
        $region30: #{pixart_block.5} parent=11 // pred_check_branch
          %317 = sbr.rel (%p315) target = $region32
        $region31: #{pixart_block.5} parent=11 // pred_region
          _
        $region32: #{pixart_block.5} parent=11 // pred_fallthru
          _
        // Predicated region
        $region33: #{pixart_block.5} parent=11 // pred_check
          %p318 = pneg %p239
        $region34: #{pixart_block.5} parent=11 // pred_check_branch
          %320 = sbr.rel (%p318) target = $region36
        $region35: #{pixart_block.5} parent=11 // pred_region
          _
        $region36: #{pixart_block.5} parent=11 // pred_fallthru
          _
        // Predicated region
        $region37: #{pixart_block.5} parent=11 // pred_check
          %p321 = pneg %p260
        $region38: #{pixart_block.5} parent=11 // pred_check_branch
          %323 = sbr.rel (%p321) target = $region40
        $region39: #{pixart_block.5} parent=11 // pred_region
          _
        $region40: #{pixart_block.5} parent=11 // pred_fallthru
          _
      $region12: #{pixart_block.5} parent=5 // pred_fallthru
        _
      %p324 = scmp.lt.s32.totalorder %s19, 2
      // Predicated region
      $region41: #{pixart_block.5} parent=5 // pred_check
        %p325 = pneg %p324
      $region42: #{pixart_block.5} parent=5 // pred_check_branch
        %327 = sbr.rel (%p325) target = $region44
      $region43: #{pixart_block.5} parent=5 // pred_region
        // Predicated region
        $region45: #{pixart_block.5} parent=43 // pred_check
          %p328 = pneg %p53
        $region46: #{pixart_block.5} parent=43 // pred_check_branch
          %330 = sbr.rel (%p328) target = $region48
        $region47: #{pixart_block.5} parent=43 // pred_region
          %p331 = scmp.lt.s32.totalorder %s26, 1
          %s332 = scalar_select %p331, %s26, 1
          %p333 = scmp.lt.s32.totalorder %s27, 0
          %s334 = scalar_select %p333, %s27, 0
          %s335 = sadd.s32 %s334, %s332
          %s336 = smul.addr %s335, 8
          %s337 = scalar_lea.vmem %s0, %s336
        $region48: #{pixart_block.5} parent=43 // pred_fallthru
          _
        // Predicated region
        $region49: #{pixart_block.5} parent=43 // pred_check
          %p338 = pneg %p81
        $region50: #{pixart_block.5} parent=43 // pred_check_branch
          %340 = sbr.rel (%p338) target = $region52
        $region51: #{pixart_block.5} parent=43 // pred_region
          %p341 = scmp.lt.s32.totalorder %s26, 1
          %s342 = scalar_select %p341, %s26, 1
          %p343 = scmp.lt.s32.totalorder %s27, 0
          %s344 = scalar_select %p343, %s27, 0
          %s345 = sadd.s32 %s344, %s342
          %s346 = smul.addr %s345, 4
          %s347 = scalar_lea.vmem %s1, %s346
        $region52: #{pixart_block.5} parent=43 // pred_fallthru
          _
        // Predicated region
        $region53: #{pixart_block.5} parent=43 // pred_check
          %p348 = pneg %p107
        $region54: #{pixart_block.5} parent=43 // pred_check_branch
          %350 = sbr.rel (%p348) target = $region56
        $region55: #{pixart_block.5} parent=43 // pred_region
          %p351 = scmp.lt.s32.totalorder %s26, 1
          %s352 = scalar_select %p351, %s26, 1
          %s353 = smul.addr %s352, 8
          %s354 = scalar_lea.vmem %s2, %s353
        $region56: #{pixart_block.5} parent=43 // pred_fallthru
          _
      $region44: #{pixart_block.5} parent=5 // pred_fallthru
        _
      %p355 = scmp.le.s32.totalorder 1, %s19
      %p356 = scmp.lt.s32.totalorder %s19, 3
      %p357 = pnand %p355, %p356
      %p358 = pneg %p357
      // Predicated region
      $region57: #{pixart_block.5} parent=5 // pred_check
        _
      $region58: #{pixart_block.5} parent=5 // pred_check_branch
        %360 = sbr.rel (%p357) target = $region60
      $region59: #{pixart_block.5} parent=5 // pred_region
        %s361 = ssub.s32 %s19, 1
        %p362 = scmp.lt.s32.totalorder %s28, 1
        %s363 = scalar_select %p362, %s28, 1
        %p364 = scmp.lt.s32.totalorder %s29, 0
        %s365 = scalar_select %p364, %s29, 0
        %s366 = sadd.s32 %s365, %s363
        %s367 = smul.addr %s366, 8
        %s368 = scalar_lea.vmem %s0, %s367
        %p369 = pneg %p59
        %p370 = pneg %p56
        %p371 = scmp.lt.s32.totalorder %s28, 1
        %s372 = scalar_select %p371, %s28, 1
        %p373 = scmp.lt.s32.totalorder %s29, 0
        %s374 = scalar_select %p373, %s29, 0
        %s375 = sadd.s32 %s374, %s372
        %s376 = smul.addr %s375, 4
        %s377 = scalar_lea.vmem %s1, %s376
        %p378 = pneg %p87
        %p379 = pneg %p84
        %p380 = scmp.lt.s32.totalorder %s28, 1
        %s381 = scalar_select %p380, %s28, 1
        %s382 = smul.addr %s381, 8
        %s383 = scalar_lea.vmem %s2, %s382
        %p384 = pneg %p113
        %p385 = pneg %p110
        %p386 = pneg %p134
        %p387 = pneg %p131
        %p388 = pneg %p155
        %p389 = pneg %p152
        %p390 = pneg %p176
        %p391 = pneg %p173
        %p392 = pneg %p197
        %p393 = pneg %p194
        %p394 = pneg %p218
        %p395 = pneg %p215
        %p396 = pneg %p239
        %p397 = pneg %p236
        %p398 = pneg %p260
        %p399 = pneg %p257
        %p400 = pneg %p288
        %p401 = pneg %p285
        %s402 = sand.u32 %s275, 1
        %s403 = scalar_lea.sflag [#allocation3], %s402
        %s404 = sand.u32 %s275, 1
        %s405 = smul.addr %s404, 8
        %s406 = scalar_lea.vmem [#allocation2], %s405
        %p407 = scmp.lt.s32.totalorder %s28, 1
        %s408 = scalar_select %p407, %s28, 1
        %p409 = scmp.lt.s32.totalorder %s29, 0
        %s410 = scalar_select %p409, %s29, 0
        %s411 = sadd.s32 %s410, %s408
        %s412 = smul.addr %s411, 8
        %s413 = scalar_lea.vmem %s0, %s412
        %p414 = scmp.lt.s32.totalorder %s28, 1
        %s415 = scalar_select %p414, %s28, 1
        %p416 = scmp.lt.s32.totalorder %s29, 0
        %s417 = scalar_select %p416, %s29, 0
        %s418 = sadd.s32 %s417, %s415
        %s419 = smul.addr %s418, 4
        %s420 = scalar_lea.vmem %s1, %s419
        %p421 = scmp.lt.s32.totalorder %s28, 1
        %s422 = scalar_select %p421, %s28, 1
        %s423 = smul.addr %s422, 8
        %s424 = scalar_lea.vmem %s2, %s423
        %v426 = vld [vmem:[%s413] sm:$0xff]
        %v427 = vld [vmem:[%s3] sm:$0x3f]
        %v428 = vld [vmem:[%s424] sm:$0x3f]
        %v429 = vadd.f32 %v427, %v428
        %v430 = vld [vmem:[%s420] sm:$0xf]
        %v431 = vld [vmem:[%s4] sm:$0xf]
        %v432 = vld [vmem:[%s4 + $0x4] sm:$0xf]
        %v433 = vld [vmem:[%s4 + $0x8] sm:$0xf]
        %v434 = vld [vmem:[%s4 + $0xc] sm:$0xf]
        %v435 = vld [vmem:[%s5] sm:$0x1]
        %v437 = vlaneseq
        %v438 = vshrl.u32 %v437, 7
        %v439 = vsub.s32 0, %v438
        %v440 = vrot.slane %v435, %v439
        %v446 = vunpack.c.l.b16 %v431
        %v447 = vunpack.c.l.b16 %v432
        %v448 = vunpack.c.l.b16 %v433
        %v449 = vunpack.c.l.b16 %v434
        %v450 = vpack.c.b16 %v447, %v446
        %v451 = vpack.c.b16 %v449, %v448
        %vm454 = vcmask 261120
        %v456 = vsel %vm454, %v430, 0
        %458 = vmatprep.subr.bf16.mxu0 0
        %459 = vmatpush1.bf16.msra.mxu0 %v450
        %460 = vmatprep.subr.bf16.mxu0 0
        %461 = vmatpush1.bf16.msra.mxu0 %v451
        %462 = vmatprep.subr.bf16.mxu0 0
        %463 = vmatpush1.bf16.msra.mxu0 0
        %464 = vmatprep.subr.bf16.mxu0 0
        %465 = vmatpush1.bf16.msra.mxu0 0
        %466 = vmatprep.subr.bf16.mxu0 0
        %467 = vmatpush1.bf16.msra.mxu0 0
        %468 = vmatprep.subr.bf16.mxu0 0
        %469 = vmatpush1.bf16.msra.mxu0 0
        %470 = vmatprep.subr.bf16.mxu0 0
        %471 = vmatpush1.bf16.msra.mxu0 0
        %472 = vmatprep.subr.bf16.mxu0 0
        %473 = vmatpush1.bf16.msra.mxu0 0
        %474 = vmatprep.subr.bf16.mxu0 0
        %475 = vmatpush1.bf16.msra.mxu0 0
        %476 = vmatprep.subr.bf16.mxu0 0
        %477 = vmatpush1.bf16.msra.mxu0 0
        %478 = vmatprep.subr.bf16.mxu0 0
        %479 = vmatpush1.bf16.msra.mxu0 0
        %480 = vmatprep.subr.bf16.mxu0 0
        %481 = vmatpush1.bf16.msra.mxu0 0
        %482 = vmatprep.subr.bf16.mxu0 0
        %483 = vmatpush1.bf16.msra.mxu0 0
        %484 = vmatprep.subr.bf16.mxu0 0
        %485 = vmatpush1.bf16.msra.mxu0 0
        %486 = vmatprep.subr.bf16.mxu0 0
        %487 = vmatpush1.bf16.msra.mxu0 0
        %488 = vmatprep.subr.bf16.mxu0 0
        %489 = vmatpush1.bf16.msra.mxu0 0
        %490 = vmatprep.mubr.bf16.mxu0 0
        %491 = vmatmul.mubr.bf16.gmra.mrb[0].mxu0 %v456
        %v492 = vpop.f32.mrb[0].mxu0
        %v493 = vadd.f32 %v440, %v492
        %v494 = vpop.f32.mrb[0].mxu0
        %v495 = vpop.f32.mrb[0].mxu0
        %v496 = vpop.f32.mrb[0].mxu0
        %497 = vdwg.mxu0
        %v498 = vlaneseq
        %v499 = vshrl.u32 %v498, 7
        %v500 = vsub.s32 2, %v499
        %v501 = vrot.slane %v429, %v500
        %v502 = vmul.f32 %v501, %v493
        %v503 = vadd.f32 %v426, %v502
        %v504 = vsel %vm454, %v503, 0.0
        %505 = vadd.xlane.f32.xlu0 %v504
        %v506 = vpop.xlane.xlu0 %505
        %v507 = vrcp.pop 32.0
        %v508 = vmul.f32 %v506, %v507
        %v509 = vsub.f32 %v503, %v508
        %v510 = vmul.f32 %v509, %v509
        %v511 = vsel %vm454, %v510, 0.0
        %512 = vadd.xlane.f32.xlu0 %v511
        %v513 = vpop.xlane.xlu0 %512
        %v514 = vmul.f32 %v513, %v507
        %v515 = vadd.f32 %v514, 1e-06
        %v516 = vrsqrt.pop %v515
        %v517 = vmul.f32 %v509, %v516
        %v518 = vadd.f32 %v429, 1.0
        %v519 = vlaneseq
        %v520 = vshrl.u32 %v519, 7
        %v521 = vsub.s32 4, %v520
        %v522 = vrot.slane %v518, %v521
        %v523 = vmul.f32 %v517, %v522
        %v524 = vlaneseq
        %v525 = vshrl.u32 %v524, 7
        %v526 = vsub.s32 3, %v525
        %v527 = vrot.slane %v429, %v526
        %v528 = vadd.f32 %v523, %v527
        %v529 = vpack.c.bf16 %v528, %v528
        %v530 = vld [vmem:[%s6] sm:$0xf]
        %v531 = vld [vmem:[%s6 + $0x4] sm:$0xf]
        %v532 = vld [vmem:[%s6 + $0x8] sm:$0xf]
        %v533 = vld [vmem:[%s6 + $0xc] sm:$0xf]
        %v534 = vld [vmem:[%s7] sm:$0x1]
        %v536 = vlaneseq
        %v537 = vshrl.u32 %v536, 7
        %v538 = vsub.s32 0, %v537
        %v539 = vrot.slane %v534, %v538
        %v545 = vunpack.c.l.b16 %v530
        %v546 = vunpack.c.l.b16 %v531
        %v547 = vunpack.c.l.b16 %v532
        %v548 = vunpack.c.l.b16 %v533
        %v549 = vpack.c.b16 %v546, %v545
        %v550 = vpack.c.b16 %v548, %v547
        %v554 = vsel %vm454, %v529, 0
        %556 = vmatprep.subr.bf16.mxu0 0
        %557 = vmatpush1.bf16.msra.mxu0 %v549
        %558 = vmatprep.subr.bf16.mxu0 0
        %559 = vmatpush1.bf16.msra.mxu0 %v550
        %560 = vmatprep.subr.bf16.mxu0 0
        %561 = vmatpush1.bf16.msra.mxu0 0
        %562 = vmatprep.subr.bf16.mxu0 0
        %563 = vmatpush1.bf16.msra.mxu0 0
        %564 = vmatprep.subr.bf16.mxu0 0
        %565 = vmatpush1.bf16.msra.mxu0 0
        %566 = vmatprep.subr.bf16.mxu0 0
        %567 = vmatpush1.bf16.msra.mxu0 0
        %568 = vmatprep.subr.bf16.mxu0 0
        %569 = vmatpush1.bf16.msra.mxu0 0
        %570 = vmatprep.subr.bf16.mxu0 0
        %571 = vmatpush1.bf16.msra.mxu0 0
        %572 = vmatprep.subr.bf16.mxu0 0
        %573 = vmatpush1.bf16.msra.mxu0 0
        %574 = vmatprep.subr.bf16.mxu0 0
        %575 = vmatpush1.bf16.msra.mxu0 0
        %576 = vmatprep.subr.bf16.mxu0 0
        %577 = vmatpush1.bf16.msra.mxu0 0
        %578 = vmatprep.subr.bf16.mxu0 0
        %579 = vmatpush1.bf16.msra.mxu0 0
        %580 = vmatprep.subr.bf16.mxu0 0
        %581 = vmatpush1.bf16.msra.mxu0 0
        %582 = vmatprep.subr.bf16.mxu0 0
        %583 = vmatpush1.bf16.msra.mxu0 0
        %584 = vmatprep.subr.bf16.mxu0 0
        %585 = vmatpush1.bf16.msra.mxu0 0
        %586 = vmatprep.subr.bf16.mxu0 0
        %587 = vmatpush1.bf16.msra.mxu0 0
        %588 = vmatprep.mubr.bf16.mxu0 0
        %589 = vmatmul.mubr.bf16.gmra.mrb[0].mxu0 %v554
        %v590 = vpop.f32.mrb[0].mxu0
        %v591 = vadd.f32 %v539, %v590
        %v592 = vpop.f32.mrb[0].mxu0
        %v593 = vpop.f32.mrb[0].mxu0
        %v594 = vpop.f32.mrb[0].mxu0
        %595 = vdwg.mxu0
        %v596 = vmul.f32 %v591, 0.5
        %v597 = vmul.f32 %v591, 0.044715
        %v598 = vmul.f32 %v597, %v591
        %v599 = vmul.f32 %v598, %v591
        %v600 = vadd.f32 %v591, %v599
        %v601 = vmul.f32 %v600, 0.7978845
        %v602 = vtanh.pop %v601
        %v603 = vadd.f32 %v602, 1.0
        %v604 = vmul.f32 %v596, %v603
        %v605 = vpack.c.bf16 %v604, %v604
        %v606 = vld [vmem:[%s8] sm:$0xf]
        %v607 = vld [vmem:[%s8 + $0x4] sm:$0xf]
        %v608 = vld [vmem:[%s8 + $0x8] sm:$0xf]
        %v609 = vld [vmem:[%s8 + $0xc] sm:$0xf]
        %v610 = vld [vmem:[%s8 + $0x10] sm:$0xf]
        %v611 = vld [vmem:[%s8 + $0x14] sm:$0xf]
        %v612 = vld [vmem:[%s8 + $0x18] sm:$0xf]
        %v613 = vld [vmem:[%s8 + $0x1c] sm:$0xf]
        %v614 = vld [vmem:[%s8 + $0x20] sm:$0xf]
        %v615 = vld [vmem:[%s8 + $0x24] sm:$0xf]
        %v616 = vld [vmem:[%s8 + $0x28] sm:$0xf]
        %v617 = vld [vmem:[%s8 + $0x2c] sm:$0xf]
        %v618 = vld [vmem:[%s8 + $0x30] sm:$0xf]
        %v619 = vld [vmem:[%s8 + $0x34] sm:$0xf]
        %v620 = vld [vmem:[%s8 + $0x38] sm:$0xf]
        %v621 = vld [vmem:[%s8 + $0x3c] sm:$0xf]
        %v622 = vld [vmem:[%s9] sm:$0x1]
        %v624 = vlaneseq
        %v625 = vshrl.u32 %v624, 7
        %v626 = vsub.s32 0, %v625
        %v627 = vrot.slane %v622, %v626
        %v645 = vunpack.c.l.b16 %v606
        %v646 = vunpack.c.l.b16 %v607
        %v647 = vunpack.c.l.b16 %v608
        %v648 = vunpack.c.l.b16 %v609
        %v649 = vunpack.c.l.b16 %v610
        %v650 = vunpack.c.l.b16 %v611
        %v651 = vunpack.c.l.b16 %v612
        %v652 = vunpack.c.l.b16 %v613
        %v653 = vunpack.c.l.b16 %v614
        %v654 = vunpack.c.l.b16 %v615
        %v655 = vunpack.c.l.b16 %v616
        %v656 = vunpack.c.l.b16 %v617
        %v657 = vunpack.c.l.b16 %v618
        %v658 = vunpack.c.l.b16 %v619
        %v659 = vunpack.c.l.b16 %v620
        %v660 = vunpack.c.l.b16 %v621
        %v661 = vpack.c.b16 %v646, %v645
        %v662 = vpack.c.b16 %v648, %v647
        %v663 = vpack.c.b16 %v650, %v649
        %v664 = vpack.c.b16 %v652, %v651
        %v665 = vpack.c.b16 %v654, %v653
        %v666 = vpack.c.b16 %v656, %v655
        %v667 = vpack.c.b16 %v658, %v657
        %v668 = vpack.c.b16 %v660, %v659
        %677 = vmatprep.subr.bf16.mxu0 0
        %678 = vmatpush1.bf16.msra.mxu0 %v661
        %679 = vmatprep.subr.bf16.mxu0 0
        %680 = vmatpush1.bf16.msra.mxu0 %v662
        %681 = vmatprep.subr.bf16.mxu0 0
        %682 = vmatpush1.bf16.msra.mxu0 %v663
        %683 = vmatprep.subr.bf16.mxu0 0
        %684 = vmatpush1.bf16.msra.mxu0 %v664
        %685 = vmatprep.subr.bf16.mxu0 0
        %686 = vmatpush1.bf16.msra.mxu0 %v665
        %687 = vmatprep.subr.bf16.mxu0 0
        %688 = vmatpush1.bf16.msra.mxu0 %v666
        %689 = vmatprep.subr.bf16.mxu0 0
        %690 = vmatpush1.bf16.msra.mxu0 %v667
        %691 = vmatprep.subr.bf16.mxu0 0
        %692 = vmatpush1.bf16.msra.mxu0 %v668
        %693 = vmatprep.subr.bf16.mxu0 0
        %694 = vmatpush1.bf16.msra.mxu0 0
        %695 = vmatprep.subr.bf16.mxu0 0
        %696 = vmatpush1.bf16.msra.mxu0 0
        %697 = vmatprep.subr.bf16.mxu0 0
        %698 = vmatpush1.bf16.msra.mxu0 0
        %699 = vmatprep.subr.bf16.mxu0 0
        %700 = vmatpush1.bf16.msra.mxu0 0
        %701 = vmatprep.subr.bf16.mxu0 0
        %702 = vmatpush1.bf16.msra.mxu0 0
        %703 = vmatprep.subr.bf16.mxu0 0
        %704 = vmatpush1.bf16.msra.mxu0 0
        %705 = vmatprep.subr.bf16.mxu0 0
        %706 = vmatpush1.bf16.msra.mxu0 0
        %707 = vmatprep.subr.bf16.mxu0 0
        %708 = vmatpush1.bf16.msra.mxu0 0
        %709 = vmatprep.mubr.bf16.mxu0 0
        %710 = vmatmul.mubr.bf16.gmra.mrb[0].mxu0 %v605
        %v711 = vpop.f32.mrb[0].mxu0
        %v712 = vadd.f32 %v627, %v711
        %v713 = vpop.f32.mrb[0].mxu0
        %v714 = vpop.f32.mrb[0].mxu0
        %v715 = vpop.f32.mrb[0].mxu0
        %716 = vdwg.mxu0
        %v717 = vlaneseq
        %v718 = vshrl.u32 %v717, 7
        %v719 = vsub.s32 5, %v718
        %v720 = vrot.slane %v429, %v719
        %v721 = vmul.f32 %v720, %v712
        %v722 = vadd.f32 %v503, %v721
        %723 = vst.msk [vmem:[%s406] sm:$0xff] %vm454, %v722
        %s724 = sand.u32 %s275, 1
        %s725 = scalar_lea.sflag [#allocation3], %s724
        %s726 = sand.u32 %s275, 1
        %s727 = smul.addr %s726, 8
        %s728 = scalar_lea.vmem [#allocation2], %s727
        // Predicated region
        $region61: #{pixart_block.5} parent=59 // pred_check
          %p729 = pneg %p285
        $region62: #{pixart_block.5} parent=59 // pred_check_branch
          %731 = sbr.rel (%p729) target = $region64
        $region63: #{pixart_block.5} parent=59 // pred_region
          %s733 = ssub.s32 128, 128
          %734 = vsyncadd %s725, %s733
          %s735 = sadd.s32 %s29, %s28
          %s736 = smul.addr %s735, 128
          %s737 = scalar_lea.hbm %s10, %s736
          %s739 = sshll.u32 %s728, 4
          %s740 = int_to_ptr.vmem [resolvable:$true] %s739
          %742 = dma.vmem_to_hbm [thread:$0]  %s740, 128, %s737, %s725
        $region64: #{pixart_block.5} parent=59 // pred_fallthru
          _
      $region60: #{pixart_block.5} parent=5 // pred_fallthru
        _
      %p743 = scmp.le.s32.totalorder 2, %s19
      // Predicated region
      $region65: #{pixart_block.5} parent=5 // pred_check
        %p744 = pneg %p743
      $region66: #{pixart_block.5} parent=5 // pred_check_branch
        %746 = sbr.rel (%p744) target = $region68
      $region67: #{pixart_block.5} parent=5 // pred_region
        %s747 = ssub.s32 %s19, 2
        // Predicated region
        $region69: #{pixart_block.5} parent=67 // pred_check
          %p748 = pneg %p291
        $region70: #{pixart_block.5} parent=67 // pred_check_branch
          %750 = sbr.rel (%p748) target = $region72
        $region71: #{pixart_block.5} parent=67 // pred_region
          %s751 = sand.u32 %s276, 1
          %s752 = scalar_lea.sflag [#allocation3], %s751
          %s753 = sand.u32 %s276, 1
          %s754 = smul.addr %s753, 8
          %s755 = scalar_lea.vmem [#allocation2], %s754
          %756 = dma.done %s752, 128
        $region72: #{pixart_block.5} parent=67 // pred_fallthru
          _
      $region68: #{pixart_block.5} parent=5 // pred_fallthru
        _
    $region6: #{pixart_block.5} parent=1 // loop_footer
      %s23 = sadd.s32 1, %s19
    $region7: #{pixart_block.5} parent=1 // loop_footer_branch
      %18 = sbr.rel target = $region3
    $region8: #{pixart_block.5} parent=1 // loop_exit
      _
    %757 = vsyncpa [#allocation3], 1
    %s758 = scalar_lea.sflag [#allocation3], 1
    %759 = vsyncpa %s758, 1

</llo_original>
